<compile_context>
chip_gen: v7x
topology: tpu7x:2x2x1
jax: 0.10.0
libtpu: 0.0.40
codegen_flags: <defaults>
</compile_context>

<pallas_src>
import jax
import jax.numpy as jnp
import numpy as np
from jax.experimental import pallas as pl
from jax.experimental.pallas import tpu as pltpu

_EPS = 1e-5      # nn.InstanceNorm2d default eps
_SLOPE = 0.2     # LeakyReLU negative slope


def _lrelu(y):
    return jnp.where(y >= 0, y, _SLOPE * y)


def _inorm_affine_lrelu(y, gb_ref):
    """InstanceNorm (biased var, eps inside rsqrt) + affine + LeakyReLU.

    y: (M, C) f32 covering the FULL spatial extent (H*Wout) of one sample, so
    the axis-0 reduction is exactly the per-(sample, channel) IN statistic.
    """
    inv_m = 1.0 / y.shape[0]
    s1 = jnp.sum(y, axis=0, keepdims=True)
    s2 = jnp.sum(y * y, axis=0, keepdims=True)
    mean = s1 * inv_m
    var = jnp.maximum(s2 * inv_m - mean * mean, 0.0)      # one-pass, biased
    inv = jax.lax.rsqrt(var + _EPS)
    gamma = gb_ref[0:1, :]
    beta = gb_ref[1:2, :]
    return _lrelu((y - mean) * (inv * gamma) + beta)


def _encoder_kernel(p1_ref, w1_ref, w2_ref, w3_ref, w4_ref,
                    gb2_ref, gb3_ref, gb4_ref,
                    out_ref, a1_ref, a2_ref, a3_ref):
    H, W4, _ = out_ref.shape
    W1 = a1_ref.shape[1] - 4          # layer-2 padding = 2 per side
    W2 = a2_ref.shape[1] - 2          # layer-3 padding = 1 per side
    W3 = a3_ref.shape[1] - 2          # layer-4 padding = 1 per side
    C1 = a1_ref.shape[2]

    # Zero the padded borders every program (unconditional, so a megacore
    # split of the batch axis stays correct — each core owns its own scratch).
    def zero_pads(ref, p):
        zp = jnp.zeros((H, p, ref.shape[2]), jnp.float32)
        ref[:, 0:p, :] = zp
        ref[:, ref.shape[1] - p:ref.shape[1], :] = zp

    zero_pads(a1_ref, 2)
    zero_pads(a2_ref, 1)
    zero_pads(a3_ref, 1)

    # ---- layer 1: Conv(1->16, (1,6), stride 2, pad 2) + LeakyReLU -----------
    # K=6 contraction -> 6 VPU multiply-adds instead of a wasted MXU pass.
    p1 = p1_ref[...]                  # (H*W1, 6)  f32 im2col of the raw input
    w1 = w1_ref[...]                  # (6, 16)    f32
    acc1 = jnp.zeros((H * W1, C1), jnp.float32)
    for t in range(6):
        acc1 = acc1 + p1[:, t:t + 1] * w1[t:t + 1, :]
    a1_ref[:, 2:2 + W1, :] = _lrelu(acc1).reshape(H, W1, C1)

    # ---- layers 2-4: in-kernel im2col (strided taps) + one bf16 MXU dot
    #      + InstanceNorm + LeakyReLU -----------------------------------------
    def conv_block(in_ref, kw, Wout, w_ref, gb_ref):
        Cin = in_ref.shape[2]
        M = H * Wout
        cols = [in_ref[:, pl.ds(t, Wout, 2), :].reshape(M, Cin)
                for t in range(kw)]
        xcat = jnp.concatenate(cols, axis=-1).astype(jnp.bfloat16)  # (M, kw*Cin)
        y = jnp.dot(xcat, w_ref[...], preferred_element_type=jnp.float32)
        return _inorm_affine_lrelu(y, gb_ref)                       # (M, Cout) f32

    y2 = conv_block(a1_ref, 6, W2, w2_ref, gb2_ref)
    a2_ref[:, 1:1 + W2, :] = y2.reshape(H, W2, a2_ref.shape[2])

    y3 = conv_block(a2_ref, 3, W3, w3_ref, gb3_ref)
    a3_ref[:, 1:1 + W3, :] = y3.reshape(H, W3, a3_ref.shape[2])

    y4 = conv_block(a3_ref, 3, W4, w4_ref, gb4_ref)
    out_ref[...] = y4.reshape(H, W4, out_ref.shape[2])


@jax.jit
def content_encoder(x_bhw, params):
    """Pallas version of ContentEncoder.forward.  Input (B, H, W)."""
    B, H, W = x_bhw.shape
    W1 = (W + 4 - 6) // 2 + 1
    W2 = (W1 + 4 - 6) // 2 + 1
    W3 = (W2 + 2 - 3) // 2 + 1
    W4 = (W3 + 2 - 3) // 2 + 1

    # Layer-1 im2col on the tiny single-channel HBM input only, built with
    # strided XLA slices (no gather).  Everything downstream stays in VMEM.
    xp = jnp.pad(x_bhw.astype(jnp.float32), ((0, 0), (0, 0), (2, 2)))
    taps = [xp[:, :, t:t + 2 * (W1 - 1) + 1:2] for t in range(6)]   # (B, H, W1)
    p1 = jnp.stack(taps, axis=-1).reshape(B, H * W1, 6)

    w1 = params["w1"].reshape(6, 16).astype(jnp.float32)            # VPU path
    w2 = params["w2"].reshape(6 * 16, 32).astype(jnp.bfloat16)      # (K, Cout)
    w3 = params["w3"].reshape(3 * 32, 64).astype(jnp.bfloat16)
    w4 = params["w4"].reshape(3 * 64, 128).astype(jnp.bfloat16)
    gb2 = jnp.stack([params["g2"], params["b2"]]).astype(jnp.float32)  # (2, C)
    gb3 = jnp.stack([params["g3"], params["b3"]]).astype(jnp.float32)
    gb4 = jnp.stack([params["g4"], params["b4"]]).astype(jnp.float32)

    def full(shape):
        return pl.BlockSpec(shape, lambda b: (0,) * len(shape))

    out = pl.pallas_call(
        _encoder_kernel,
        grid=(B,),
        in_specs=[
            pl.BlockSpec((None, H * W1, 6), lambda b: (b, 0, 0)),   # layer-1 im2col
            full((6, 16)),
            full((6 * 16, 32)),
            full((3 * 32, 64)),
            full((3 * 64, 128)),
            full((2, 32)),
            full((2, 64)),
            full((2, 128)),
        ],
        out_specs=pl.BlockSpec((None, H, W4, 128), lambda b: (b, 0, 0, 0)),
        out_shape=jax.ShapeDtypeStruct((B, H, W4, 128), jnp.float32),
        scratch_shapes=[
            pltpu.VMEM((H, W1 + 4, 16), jnp.float32),   # padded en1 (VMEM-resident)
            pltpu.VMEM((H, W2 + 2, 32), jnp.float32),   # padded en2
            pltpu.VMEM((H, W3 + 2, 64), jnp.float32),   # padded en3
        ],
        compiler_params=pltpu.CompilerParams(
            dimension_semantics=("parallel",)),
    )(p1, w1, w2, w3, w4, gb2, gb3, gb4)
    return out                                          # (B, H, W4, 128) NHWC


# ---------------- pure-JAX reference (for correctness check) ----------------

def _ref_conv(x_nhwc, w_kic, stride, pad, bf16_operands):
    lhs, rhs = x_nhwc, w_kic[None]                      # rhs: HWIO
    if bf16_operands:
        # mirror the kernel's bf16 MXU operands (accumulation stays f32)
        lhs = lhs.astype(jnp.bfloat16).astype(jnp.float32)
        rhs = rhs.astype(jnp.bfloat16).astype(jnp.float32)
    return jax.lax.conv_general_dilated(
        lhs, rhs, window_strides=(1, stride), padding=((0, 0), (pad, pad)),
        dimension_numbers=("NHWC", "HWIO", "NHWC"),
        precision=jax.lax.Precision.HIGHEST)


def _ref_in(y, g, b):
    m = jnp.mean(y, axis=(1, 2), keepdims=True)
    v = jnp.mean(jnp.square(y - m), axis=(1, 2), keepdims=True)
    return (y - m) * jax.lax.rsqrt(v + _EPS) * g + b


@jax.jit
def content_encoder_ref(x_bhw, p):
    x = x_bhw[..., None]
    e1 = _lrelu(_ref_conv(x, p["w1"], 2, 2, False))
    e2 = _lrelu(_ref_in(_ref_conv(e1, p["w2"], 2, 2, True), p["g2"], p["b2"]))
    e3 = _lrelu(_ref_in(_ref_conv(e2, p["w3"], 2, 1, True), p["g3"], p["b3"]))
    e4 = _lrelu(_ref_in(_ref_conv(e3, p["w4"], 2, 1, True), p["g4"], p["b4"]))
    return e4


# ---------------- main ----------------

if __name__ == "__main__":
    key = jax.random.PRNGKey(0)
    ks = jax.random.split(key, 12)
    B, H, W = 2, 4, 32
    x = jax.random.normal(ks[0], (B, H, W), jnp.float32)

    # Conv weights stored as (kw, Cin, Cout), i.e. torch weight (Cout, Cin, 1, kw)
    # transposed to (kw, Cin, Cout).
    p = {
        "w1": 0.2 * jax.random.normal(ks[1], (6, 1, 16), jnp.float32),
        "w2": 0.1 * jax.random.normal(ks[2], (6, 16, 32), jnp.float32),
        "w3": 0.1 * jax.random.normal(ks[3], (3, 32, 64), jnp.float32),
        "w4": 0.1 * jax.random.normal(ks[4], (3, 64, 128), jnp.float32),
        "g2": 1.0 + 0.1 * jax.random.normal(ks[5], (32,), jnp.float32),
        "b2": 0.1 * jax.random.normal(ks[6], (32,), jnp.float32),
        "g3": 1.0 + 0.1 * jax.random.normal(ks[7], (64,), jnp.float32),
        "b3": 0.1 * jax.random.normal(ks[8], (64,), jnp.float32),
        "g4": 1.0 + 0.1 * jax.random.normal(ks[9], (128,), jnp.float32),
        "b4": 0.1 * jax.random.normal(ks[10], (128,), jnp.float32),
    }

    out = jax.block_until_ready(content_encoder(x, p))
    ref = jax.block_until_ready(content_encoder_ref(x, p))

    # W=32 -> 16 -> 8 -> 4 -> 2 ; final channels 128 (NHWC).
    assert out.shape == (B, H, 2, 128), out.shape
    # Reference mirrors the kernel's bf16 MXU operands; slack covers rare
    # bf16 rounding-boundary flips between the two f32 pre-activations.
    np.testing.assert_allclose(np.asarray(out), np.asarray(ref),
                               rtol=5e-3, atol=5e-3)
    print("KERNEL_OK")
</pallas_src>

<mosaic_0001>
module attributes {stable_mosaic.version = 11 : i64} {
  func.func @_encoder_kernel(%arg0: i32, %arg1: memref<1x64x6xf32, #tpu.memory_space<vmem>>, %arg2: memref<6x16xf32, #tpu.memory_space<vmem>>, %arg3: memref<96x32xbf16, #tpu.memory_space<vmem>>, %arg4: memref<96x64xbf16, #tpu.memory_space<vmem>>, %arg5: memref<192x128xbf16, #tpu.memory_space<vmem>>, %arg6: memref<2x32xf32, #tpu.memory_space<vmem>>, %arg7: memref<2x64xf32, #tpu.memory_space<vmem>>, %arg8: memref<2x128xf32, #tpu.memory_space<vmem>>, %arg9: memref<1x4x2x128xf32, #tpu.memory_space<vmem>>, %arg10: memref<4x20x16xf32, #tpu.memory_space<vmem>>, %arg11: memref<4x10x32xf32, #tpu.memory_space<vmem>>, %arg12: memref<4x6x64xf32, #tpu.memory_space<vmem>>) attributes {dimension_semantics = [#tpu.dimension_semantics<parallel>], iteration_bounds = array<i64: 2>, scalar_prefetch = 0 : i64, scratch_operands = 3 : i64, tpu.core_type = #tpu.core_type<tc>, window_params = [{transform_indices = @transform_0, window_bounds = array<i64: 1, 64, 6>}, {pipeline_mode = #tpu.pipeline_mode<synchronous>, transform_indices = @transform_1, window_bounds = array<i64: 6, 16>}, {pipeline_mode = #tpu.pipeline_mode<synchronous>, transform_indices = @transform_2, window_bounds = array<i64: 96, 32>}, {pipeline_mode = #tpu.pipeline_mode<synchronous>, transform_indices = @transform_3, window_bounds = array<i64: 96, 64>}, {pipeline_mode = #tpu.pipeline_mode<synchronous>, transform_indices = @transform_4, window_bounds = array<i64: 192, 128>}, {pipeline_mode = #tpu.pipeline_mode<synchronous>, transform_indices = @transform_5, window_bounds = array<i64: 2, 32>}, {pipeline_mode = #tpu.pipeline_mode<synchronous>, transform_indices = @transform_6, window_bounds = array<i64: 2, 64>}, {pipeline_mode = #tpu.pipeline_mode<synchronous>, transform_indices = @transform_7, window_bounds = array<i64: 2, 128>}, {transform_indices = @transform_8, window_bounds = array<i64: 1, 4, 2, 128>}]} {
    %cst = arith.constant 0.000000e+00 : f32
    %0 = vector.broadcast %cst : f32 to vector<4x2x16xf32>
    %c0 = arith.constant 0 : index
    %c0_0 = arith.constant 0 : index
    %c0_1 = arith.constant 0 : index
    %1 = vector.load %arg10[%c0, %c0_0, %c0_1] : memref<4x20x16xf32, #tpu.memory_space<vmem>>, vector<4x2x16xf32>
    tpu.vector_store %arg10[%c0, %c0_0, %c0_1], %0 {strides = array<i32>} : memref<4x20x16xf32, #tpu.memory_space<vmem>>, vector<4x2x16xf32>,
    %c0_2 = arith.constant 0 : index
    %c18 = arith.constant 18 : index
    %c0_3 = arith.constant 0 : index
    %2 = vector.load %arg10[%c0_2, %c18, %c0_3] : memref<4x20x16xf32, #tpu.memory_space<vmem>>, vector<4x2x16xf32>
    tpu.vector_store %arg10[%c0_2, %c18, %c0_3], %0 {strides = array<i32>} : memref<4x20x16xf32, #tpu.memory_space<vmem>>, vector<4x2x16xf32>,
    %cst_4 = arith.constant 0.000000e+00 : f32
    %3 = vector.broadcast %cst_4 : f32 to vector<4x1x32xf32>
    %c0_5 = arith.constant 0 : index
    %c0_6 = arith.constant 0 : index
    %c0_7 = arith.constant 0 : index
    %4 = vector.load %arg11[%c0_5, %c0_6, %c0_7] : memref<4x10x32xf32, #tpu.memory_space<vmem>>, vector<4x1x32xf32>
    tpu.vector_store %arg11[%c0_5, %c0_6, %c0_7], %3 {strides = array<i32>} : memref<4x10x32xf32, #tpu.memory_space<vmem>>, vector<4x1x32xf32>,
    %c0_8 = arith.constant 0 : index
    %c9 = arith.constant 9 : index
    %c0_9 = arith.constant 0 : index
    %5 = vector.load %arg11[%c0_8, %c9, %c0_9] : memref<4x10x32xf32, #tpu.memory_space<vmem>>, vector<4x1x32xf32>
    tpu.vector_store %arg11[%c0_8, %c9, %c0_9], %3 {strides = array<i32>} : memref<4x10x32xf32, #tpu.memory_space<vmem>>, vector<4x1x32xf32>,
    %cst_10 = arith.constant 0.000000e+00 : f32
    %6 = vector.broadcast %cst_10 : f32 to vector<4x1x64xf32>
    %c0_11 = arith.constant 0 : index
    %c0_12 = arith.constant 0 : index
    %c0_13 = arith.constant 0 : index
    %7 = vector.load %arg12[%c0_11, %c0_12, %c0_13] : memref<4x6x64xf32, #tpu.memory_space<vmem>>, vector<4x1x64xf32>
    tpu.vector_store %arg12[%c0_11, %c0_12, %c0_13], %6 {strides = array<i32>} : memref<4x6x64xf32, #tpu.memory_space<vmem>>, vector<4x1x64xf32>,
    %c0_14 = arith.constant 0 : index
    %c5 = arith.constant 5 : index
    %c0_15 = arith.constant 0 : index
    %8 = vector.load %arg12[%c0_14, %c5, %c0_15] : memref<4x6x64xf32, #tpu.memory_space<vmem>>, vector<4x1x64xf32>
    tpu.vector_store %arg12[%c0_14, %c5, %c0_15], %6 {strides = array<i32>} : memref<4x6x64xf32, #tpu.memory_space<vmem>>, vector<4x1x64xf32>,
    %c0_16 = arith.constant 0 : index
    %c0_17 = arith.constant 0 : index
    %c0_18 = arith.constant 0 : index
    %9 = vector.load %arg1[%c0_16, %c0_17, %c0_18] : memref<1x64x6xf32, #tpu.memory_space<vmem>>, vector<1x64x6xf32>
    %10 = vector.shape_cast %9 : vector<1x64x6xf32> to vector<64x6xf32>
    %c0_19 = arith.constant 0 : index
    %c0_20 = arith.constant 0 : index
    %11 = vector.load %arg2[%c0_19, %c0_20] : memref<6x16xf32, #tpu.memory_space<vmem>>, vector<6x16xf32>
    %cst_21 = arith.constant 0.000000e+00 : f32
    %12 = vector.broadcast %cst_21 : f32 to vector<64x16xf32>
    %13 = vector.extract_strided_slice %10 {offsets = [0, 0], sizes = [64, 1], strides = [1, 1]} : vector<64x6xf32> to vector<64x1xf32>
    %14 = vector.extract_strided_slice %11 {offsets = [0, 0], sizes = [1, 16], strides = [1, 1]} : vector<6x16xf32> to vector<1x16xf32>
    %15 = vector.broadcast %13 : vector<64x1xf32> to vector<64x16xf32>
    %16 = vector.broadcast %14 : vector<1x16xf32> to vector<64x16xf32>
    %17 = arith.mulf %15, %16 : vector<64x16xf32>
    %18 = arith.addf %12, %17 : vector<64x16xf32>
    %19 = vector.extract_strided_slice %10 {offsets = [0, 1], sizes = [64, 1], strides = [1, 1]} : vector<64x6xf32> to vector<64x1xf32>
    %20 = vector.extract_strided_slice %11 {offsets = [1, 0], sizes = [1, 16], strides = [1, 1]} : vector<6x16xf32> to vector<1x16xf32>
    %21 = vector.broadcast %19 : vector<64x1xf32> to vector<64x16xf32>
    %22 = vector.broadcast %20 : vector<1x16xf32> to vector<64x16xf32>
    %23 = arith.mulf %21, %22 : vector<64x16xf32>
    %24 = arith.addf %18, %23 : vector<64x16xf32>
    %25 = vector.extract_strided_slice %10 {offsets = [0, 2], sizes = [64, 1], strides = [1, 1]} : vector<64x6xf32> to vector<64x1xf32>
    %26 = vector.extract_strided_slice %11 {offsets = [2, 0], sizes = [1, 16], strides = [1, 1]} : vector<6x16xf32> to vector<1x16xf32>
    %27 = vector.broadcast %25 : vector<64x1xf32> to vector<64x16xf32>
    %28 = vector.broadcast %26 : vector<1x16xf32> to vector<64x16xf32>
    %29 = arith.mulf %27, %28 : vector<64x16xf32>
    %30 = arith.addf %24, %29 : vector<64x16xf32>
    %31 = vector.extract_strided_slice %10 {offsets = [0, 3], sizes = [64, 1], strides = [1, 1]} : vector<64x6xf32> to vector<64x1xf32>
    %32 = vector.extract_strided_slice %11 {offsets = [3, 0], sizes = [1, 16], strides = [1, 1]} : vector<6x16xf32> to vector<1x16xf32>
    %33 = vector.broadcast %31 : vector<64x1xf32> to vector<64x16xf32>
    %34 = vector.broadcast %32 : vector<1x16xf32> to vector<64x16xf32>
    %35 = arith.mulf %33, %34 : vector<64x16xf32>
    %36 = arith.addf %30, %35 : vector<64x16xf32>
    %37 = vector.extract_strided_slice %10 {offsets = [0, 4], sizes = [64, 1], strides = [1, 1]} : vector<64x6xf32> to vector<64x1xf32>
    %38 = vector.extract_strided_slice %11 {offsets = [4, 0], sizes = [1, 16], strides = [1, 1]} : vector<6x16xf32> to vector<1x16xf32>
    %39 = vector.broadcast %37 : vector<64x1xf32> to vector<64x16xf32>
    %40 = vector.broadcast %38 : vector<1x16xf32> to vector<64x16xf32>
    %41 = arith.mulf %39, %40 : vector<64x16xf32>
    %42 = arith.addf %36, %41 : vector<64x16xf32>
    %43 = vector.extract_strided_slice %10 {offsets = [0, 5], sizes = [64, 1], strides = [1, 1]} : vector<64x6xf32> to vector<64x1xf32>
    %44 = vector.extract_strided_slice %11 {offsets = [5, 0], sizes = [1, 16], strides = [1, 1]} : vector<6x16xf32> to vector<1x16xf32>
    %45 = vector.broadcast %43 : vector<64x1xf32> to vector<64x16xf32>
    %46 = vector.broadcast %44 : vector<1x16xf32> to vector<64x16xf32>
    %47 = arith.mulf %45, %46 : vector<64x16xf32>
    %48 = arith.addf %42, %47 : vector<64x16xf32>
    %cst_22 = arith.constant 0.000000e+00 : f32
    %49 = vector.broadcast %cst_22 : f32 to vector<64x16xf32>
    %50 = arith.cmpf oge, %48, %49 : vector<64x16xf32>
    %cst_23 = arith.constant 2.000000e-01 : f32
    %51 = vector.broadcast %cst_23 : f32 to vector<64x16xf32>
    %52 = arith.mulf %51, %48 : vector<64x16xf32>
    %53 = arith.select %50, %48, %52 : vector<64x16xi1>, vector<64x16xf32>
    %54 = vector.shape_cast %53 : vector<64x16xf32> to vector<4x16x16xf32>
    %c0_24 = arith.constant 0 : index
    %c2 = arith.constant 2 : index
    %c0_25 = arith.constant 0 : index
    %55 = vector.load %arg10[%c0_24, %c2, %c0_25] : memref<4x20x16xf32, #tpu.memory_space<vmem>>, vector<4x16x16xf32>
    tpu.vector_store %arg10[%c0_24, %c2, %c0_25], %54 {strides = array<i32>} : memref<4x20x16xf32, #tpu.memory_space<vmem>>, vector<4x16x16xf32>,
    %c0_26 = arith.constant 0 : index
    %c0_27 = arith.constant 0 : index
    %c0_28 = arith.constant 0 : index
    %56 = tpu.strided_load %arg10[%c0_26, %c0_27, %c0_28] {strides = array<i32: 1, 2, 1>} : memref<4x20x16xf32, #tpu.memory_space<vmem>>, vector<4x8x16xf32>
    %57 = vector.shape_cast %56 : vector<4x8x16xf32> to vector<32x16xf32>
    %c0_29 = arith.constant 0 : index
    %c1 = arith.constant 1 : index
    %c0_30 = arith.constant 0 : index
    %58 = tpu.strided_load %arg10[%c0_29, %c1, %c0_30] {strides = array<i32: 1, 2, 1>} : memref<4x20x16xf32, #tpu.memory_space<vmem>>, vector<4x8x16xf32>
    %59 = vector.shape_cast %58 : vector<4x8x16xf32> to vector<32x16xf32>
    %c0_31 = arith.constant 0 : index
    %c2_32 = arith.constant 2 : index
    %c0_33 = arith.constant 0 : index
    %60 = tpu.strided_load %arg10[%c0_31, %c2_32, %c0_33] {strides = array<i32: 1, 2, 1>} : memref<4x20x16xf32, #tpu.memory_space<vmem>>, vector<4x8x16xf32>
    %61 = vector.shape_cast %60 : vector<4x8x16xf32> to vector<32x16xf32>
    %c0_34 = arith.constant 0 : index
    %c3 = arith.constant 3 : index
    %c0_35 = arith.constant 0 : index
    %62 = tpu.strided_load %arg10[%c0_34, %c3, %c0_35] {strides = array<i32: 1, 2, 1>} : memref<4x20x16xf32, #tpu.memory_space<vmem>>, vector<4x8x16xf32>
    %63 = vector.shape_cast %62 : vector<4x8x16xf32> to vector<32x16xf32>
    %c0_36 = arith.constant 0 : index
    %c4 = arith.constant 4 : index
    %c0_37 = arith.constant 0 : index
    %64 = tpu.strided_load %arg10[%c0_36, %c4, %c0_37] {strides = array<i32: 1, 2, 1>} : memref<4x20x16xf32, #tpu.memory_space<vmem>>, vector<4x8x16xf32>
    %65 = vector.shape_cast %64 : vector<4x8x16xf32> to vector<32x16xf32>
    %c0_38 = arith.constant 0 : index
    %c5_39 = arith.constant 5 : index
    %c0_40 = arith.constant 0 : index
    %66 = tpu.strided_load %arg10[%c0_38, %c5_39, %c0_40] {strides = array<i32: 1, 2, 1>} : memref<4x20x16xf32, #tpu.memory_space<vmem>>, vector<4x8x16xf32>
    %67 = vector.shape_cast %66 : vector<4x8x16xf32> to vector<32x16xf32>
    %68 = tpu.concatenate %57, %59, %61, %63, %65, %67 in 1 : vector<32x16xf32>, vector<32x16xf32>, vector<32x16xf32>, vector<32x16xf32>, vector<32x16xf32>, vector<32x16xf32> -> vector<32x96xf32>
    %69 = arith.truncf %68 : vector<32x96xf32> to vector<32x96xbf16>
    %c0_41 = arith.constant 0 : index
    %c0_42 = arith.constant 0 : index
    %70 = vector.load %arg3[%c0_41, %c0_42] : memref<96x32xbf16, #tpu.memory_space<vmem>>, vector<96x32xbf16>
    %cst_43 = arith.constant dense<0.000000e+00> : vector<32x32xf32>
    %71 = tpu.matmul %69, %70, %cst_43 {dimension_numbers = #tpu.dot_dimension_numbers<[1], [0], [0], [1], [0, 0, 1, 1], [], []>} : vector<32x96xbf16>, vector<96x32xbf16>, vector<32x32xf32> -> vector<32x32xf32>
    %cst_44 = arith.constant dense<0.000000e+00> : vector<32xf32>
    %72 = vector.multi_reduction <add>, %71, %cst_44 [0] : vector<32x32xf32> to vector<32xf32>
    %73 = vector.shape_cast %72 : vector<32xf32> to vector<1x32xf32>
    %74 = arith.mulf %71, %71 : vector<32x32xf32>
    %cst_45 = arith.constant dense<0.000000e+00> : vector<32xf32>
    %75 = vector.multi_reduction <add>, %74, %cst_45 [0] : vector<32x32xf32> to vector<32xf32>
    %76 = vector.shape_cast %75 : vector<32xf32> to vector<1x32xf32>
    %cst_46 = arith.constant 3.125000e-02 : f32
    %77 = vector.broadcast %cst_46 : f32 to vector<1x32xf32>
    %78 = arith.mulf %73, %77 : vector<1x32xf32>
    %cst_47 = arith.constant 3.125000e-02 : f32
    %79 = vector.broadcast %cst_47 : f32 to vector<1x32xf32>
    %80 = arith.mulf %76, %79 : vector<1x32xf32>
    %81 = arith.mulf %78, %78 : vector<1x32xf32>
    %82 = arith.subf %80, %81 : vector<1x32xf32>
    %cst_48 = arith.constant 0.000000e+00 : f32
    %83 = vector.broadcast %cst_48 : f32 to vector<1x32xf32>
    %84 = arith.maximumf %82, %83 : vector<1x32xf32>
    %cst_49 = arith.constant 9.99999974E-6 : f32
    %85 = vector.broadcast %cst_49 : f32 to vector<1x32xf32>
    %86 = arith.addf %84, %85 : vector<1x32xf32>
    %87 = math.rsqrt %86 : vector<1x32xf32>
    %c0_50 = arith.constant 0 : index
    %c0_51 = arith.constant 0 : index
    %88 = vector.load %arg6[%c0_50, %c0_51] : memref<2x32xf32, #tpu.memory_space<vmem>>, vector<1x32xf32>
    %c1_52 = arith.constant 1 : index
    %c0_53 = arith.constant 0 : index
    %89 = vector.load %arg6[%c1_52, %c0_53] : memref<2x32xf32, #tpu.memory_space<vmem>>, vector<1x32xf32>
    %90 = vector.broadcast %78 : vector<1x32xf32> to vector<32x32xf32>
    %91 = arith.subf %71, %90 : vector<32x32xf32>
    %92 = arith.mulf %87, %88 : vector<1x32xf32>
    %93 = vector.broadcast %92 : vector<1x32xf32> to vector<32x32xf32>
    %94 = arith.mulf %91, %93 : vector<32x32xf32>
    %95 = vector.broadcast %89 : vector<1x32xf32> to vector<32x32xf32>
    %96 = arith.addf %94, %95 : vector<32x32xf32>
    %cst_54 = arith.constant 0.000000e+00 : f32
    %97 = vector.broadcast %cst_54 : f32 to vector<32x32xf32>
    %98 = arith.cmpf oge, %96, %97 : vector<32x32xf32>
    %cst_55 = arith.constant 2.000000e-01 : f32
    %99 = vector.broadcast %cst_55 : f32 to vector<32x32xf32>
    %100 = arith.mulf %99, %96 : vector<32x32xf32>
    %101 = arith.select %98, %96, %100 : vector<32x32xi1>, vector<32x32xf32>
    %102 = vector.shape_cast %101 : vector<32x32xf32> to vector<4x8x32xf32>
    %c0_56 = arith.constant 0 : index
    %c1_57 = arith.constant 1 : index
    %c0_58 = arith.constant 0 : index
    %103 = vector.load %arg11[%c0_56, %c1_57, %c0_58] : memref<4x10x32xf32, #tpu.memory_space<vmem>>, vector<4x8x32xf32>
    tpu.vector_store %arg11[%c0_56, %c1_57, %c0_58], %102 {strides = array<i32>} : memref<4x10x32xf32, #tpu.memory_space<vmem>>, vector<4x8x32xf32>,
    %c0_59 = arith.constant 0 : index
    %c0_60 = arith.constant 0 : index
    %c0_61 = arith.constant 0 : index
    %104 = tpu.strided_load %arg11[%c0_59, %c0_60, %c0_61] {strides = array<i32: 1, 2, 1>} : memref<4x10x32xf32, #tpu.memory_space<vmem>>, vector<4x4x32xf32>
    %105 = vector.shape_cast %104 : vector<4x4x32xf32> to vector<16x32xf32>
    %c0_62 = arith.constant 0 : index
    %c1_63 = arith.constant 1 : index
    %c0_64 = arith.constant 0 : index
    %106 = tpu.strided_load %arg11[%c0_62, %c1_63, %c0_64] {strides = array<i32: 1, 2, 1>} : memref<4x10x32xf32, #tpu.memory_space<vmem>>, vector<4x4x32xf32>
    %107 = vector.shape_cast %106 : vector<4x4x32xf32> to vector<16x32xf32>
    %c0_65 = arith.constant 0 : index
    %c2_66 = arith.constant 2 : index
    %c0_67 = arith.constant 0 : index
    %108 = tpu.strided_load %arg11[%c0_65, %c2_66, %c0_67] {strides = array<i32: 1, 2, 1>} : memref<4x10x32xf32, #tpu.memory_space<vmem>>, vector<4x4x32xf32>
    %109 = vector.shape_cast %108 : vector<4x4x32xf32> to vector<16x32xf32>
    %110 = tpu.concatenate %105, %107, %109 in 1 : vector<16x32xf32>, vector<16x32xf32>, vector<16x32xf32> -> vector<16x96xf32>
    %111 = arith.truncf %110 : vector<16x96xf32> to vector<16x96xbf16>
    %c0_68 = arith.constant 0 : index
    %c0_69 = arith.constant 0 : index
    %112 = vector.load %arg4[%c0_68, %c0_69] : memref<96x64xbf16, #tpu.memory_space<vmem>>, vector<96x64xbf16>
    %cst_70 = arith.constant dense<0.000000e+00> : vector<16x64xf32>
    %113 = tpu.matmul %111, %112, %cst_70 {dimension_numbers = #tpu.dot_dimension_numbers<[1], [0], [0], [1], [0, 0, 1, 1], [], []>} : vector<16x96xbf16>, vector<96x64xbf16>, vector<16x64xf32> -> vector<16x64xf32>
    %cst_71 = arith.constant dense<0.000000e+00> : vector<64xf32>
    %114 = vector.multi_reduction <add>, %113, %cst_71 [0] : vector<16x64xf32> to vector<64xf32>
    %115 = vector.shape_cast %114 : vector<64xf32> to vector<1x64xf32>
    %116 = arith.mulf %113, %113 : vector<16x64xf32>
    %cst_72 = arith.constant dense<0.000000e+00> : vector<64xf32>
    %117 = vector.multi_reduction <add>, %116, %cst_72 [0] : vector<16x64xf32> to vector<64xf32>
    %118 = vector.shape_cast %117 : vector<64xf32> to vector<1x64xf32>
    %cst_73 = arith.constant 6.250000e-02 : f32
    %119 = vector.broadcast %cst_73 : f32 to vector<1x64xf32>
    %120 = arith.mulf %115, %119 : vector<1x64xf32>
    %cst_74 = arith.constant 6.250000e-02 : f32
    %121 = vector.broadcast %cst_74 : f32 to vector<1x64xf32>
    %122 = arith.mulf %118, %121 : vector<1x64xf32>
    %123 = arith.mulf %120, %120 : vector<1x64xf32>
    %124 = arith.subf %122, %123 : vector<1x64xf32>
    %cst_75 = arith.constant 0.000000e+00 : f32
    %125 = vector.broadcast %cst_75 : f32 to vector<1x64xf32>
    %126 = arith.maximumf %124, %125 : vector<1x64xf32>
    %cst_76 = arith.constant 9.99999974E-6 : f32
    %127 = vector.broadcast %cst_76 : f32 to vector<1x64xf32>
    %128 = arith.addf %126, %127 : vector<1x64xf32>
    %129 = math.rsqrt %128 : vector<1x64xf32>
    %c0_77 = arith.constant 0 : index
    %c0_78 = arith.constant 0 : index
    %130 = vector.load %arg7[%c0_77, %c0_78] : memref<2x64xf32, #tpu.memory_space<vmem>>, vector<1x64xf32>
    %c1_79 = arith.constant 1 : index
    %c0_80 = arith.constant 0 : index
    %131 = vector.load %arg7[%c1_79, %c0_80] : memref<2x64xf32, #tpu.memory_space<vmem>>, vector<1x64xf32>
    %132 = vector.broadcast %120 : vector<1x64xf32> to vector<16x64xf32>
    %133 = arith.subf %113, %132 : vector<16x64xf32>
    %134 = arith.mulf %129, %130 : vector<1x64xf32>
    %135 = vector.broadcast %134 : vector<1x64xf32> to vector<16x64xf32>
    %136 = arith.mulf %133, %135 : vector<16x64xf32>
    %137 = vector.broadcast %131 : vector<1x64xf32> to vector<16x64xf32>
    %138 = arith.addf %136, %137 : vector<16x64xf32>
    %cst_81 = arith.constant 0.000000e+00 : f32
    %139 = vector.broadcast %cst_81 : f32 to vector<16x64xf32>
    %140 = arith.cmpf oge, %138, %139 : vector<16x64xf32>
    %cst_82 = arith.constant 2.000000e-01 : f32
    %141 = vector.broadcast %cst_82 : f32 to vector<16x64xf32>
    %142 = arith.mulf %141, %138 : vector<16x64xf32>
    %143 = arith.select %140, %138, %142 : vector<16x64xi1>, vector<16x64xf32>
    %144 = vector.shape_cast %143 : vector<16x64xf32> to vector<4x4x64xf32>
    %c0_83 = arith.constant 0 : index
    %c1_84 = arith.constant 1 : index
    %c0_85 = arith.constant 0 : index
    %145 = vector.load %arg12[%c0_83, %c1_84, %c0_85] : memref<4x6x64xf32, #tpu.memory_space<vmem>>, vector<4x4x64xf32>
    tpu.vector_store %arg12[%c0_83, %c1_84, %c0_85], %144 {strides = array<i32>} : memref<4x6x64xf32, #tpu.memory_space<vmem>>, vector<4x4x64xf32>,
    %c0_86 = arith.constant 0 : index
    %c0_87 = arith.constant 0 : index
    %c0_88 = arith.constant 0 : index
    %146 = tpu.strided_load %arg12[%c0_86, %c0_87, %c0_88] {strides = array<i32: 1, 2, 1>} : memref<4x6x64xf32, #tpu.memory_space<vmem>>, vector<4x2x64xf32>
    %147 = vector.shape_cast %146 : vector<4x2x64xf32> to vector<8x64xf32>
    %c0_89 = arith.constant 0 : index
    %c1_90 = arith.constant 1 : index
    %c0_91 = arith.constant 0 : index
    %148 = tpu.strided_load %arg12[%c0_89, %c1_90, %c0_91] {strides = array<i32: 1, 2, 1>} : memref<4x6x64xf32, #tpu.memory_space<vmem>>, vector<4x2x64xf32>
    %149 = vector.shape_cast %148 : vector<4x2x64xf32> to vector<8x64xf32>
    %c0_92 = arith.constant 0 : index
    %c2_93 = arith.constant 2 : index
    %c0_94 = arith.constant 0 : index
    %150 = tpu.strided_load %arg12[%c0_92, %c2_93, %c0_94] {strides = array<i32: 1, 2, 1>} : memref<4x6x64xf32, #tpu.memory_space<vmem>>, vector<4x2x64xf32>
    %151 = vector.shape_cast %150 : vector<4x2x64xf32> to vector<8x64xf32>
    %152 = tpu.concatenate %147, %149, %151 in 1 : vector<8x64xf32>, vector<8x64xf32>, vector<8x64xf32> -> vector<8x192xf32>
    %153 = arith.truncf %152 : vector<8x192xf32> to vector<8x192xbf16>
    %c0_95 = arith.constant 0 : index
    %c0_96 = arith.constant 0 : index
    %154 = vector.load %arg5[%c0_95, %c0_96] : memref<192x128xbf16, #tpu.memory_space<vmem>>, vector<192x128xbf16>
    %cst_97 = arith.constant dense<0.000000e+00> : vector<8x128xf32>
    %155 = tpu.matmul %153, %154, %cst_97 {dimension_numbers = #tpu.dot_dimension_numbers<[1], [0], [0], [1], [0, 0, 1, 1], [], []>} : vector<8x192xbf16>, vector<192x128xbf16>, vector<8x128xf32> -> vector<8x128xf32>
    %cst_98 = arith.constant dense<0.000000e+00> : vector<128xf32>
    %156 = vector.multi_reduction <add>, %155, %cst_98 [0] : vector<8x128xf32> to vector<128xf32>
    %157 = vector.shape_cast %156 : vector<128xf32> to vector<1x128xf32>
    %158 = arith.mulf %155, %155 : vector<8x128xf32>
    %cst_99 = arith.constant dense<0.000000e+00> : vector<128xf32>
    %159 = vector.multi_reduction <add>, %158, %cst_99 [0] : vector<8x128xf32> to vector<128xf32>
    %160 = vector.shape_cast %159 : vector<128xf32> to vector<1x128xf32>
    %cst_100 = arith.constant 1.250000e-01 : f32
    %161 = vector.broadcast %cst_100 : f32 to vector<1x128xf32>
    %162 = arith.mulf %157, %161 : vector<1x128xf32>
    %cst_101 = arith.constant 1.250000e-01 : f32
    %163 = vector.broadcast %cst_101 : f32 to vector<1x128xf32>
    %164 = arith.mulf %160, %163 : vector<1x128xf32>
    %165 = arith.mulf %162, %162 : vector<1x128xf32>
    %166 = arith.subf %164, %165 : vector<1x128xf32>
    %cst_102 = arith.constant 0.000000e+00 : f32
    %167 = vector.broadcast %cst_102 : f32 to vector<1x128xf32>
    %168 = arith.maximumf %166, %167 : vector<1x128xf32>
    %cst_103 = arith.constant 9.99999974E-6 : f32
    %169 = vector.broadcast %cst_103 : f32 to vector<1x128xf32>
    %170 = arith.addf %168, %169 : vector<1x128xf32>
    %171 = math.rsqrt %170 : vector<1x128xf32>
    %c0_104 = arith.constant 0 : index
    %c0_105 = arith.constant 0 : index
    %172 = vector.load %arg8[%c0_104, %c0_105] : memref<2x128xf32, #tpu.memory_space<vmem>>, vector<1x128xf32>
    %c1_106 = arith.constant 1 : index
    %c0_107 = arith.constant 0 : index
    %173 = vector.load %arg8[%c1_106, %c0_107] : memref<2x128xf32, #tpu.memory_space<vmem>>, vector<1x128xf32>
    %174 = vector.broadcast %162 : vector<1x128xf32> to vector<8x128xf32>
    %175 = arith.subf %155, %174 : vector<8x128xf32>
    %176 = arith.mulf %171, %172 : vector<1x128xf32>
    %177 = vector.broadcast %176 : vector<1x128xf32> to vector<8x128xf32>
    %178 = arith.mulf %175, %177 : vector<8x128xf32>
    %179 = vector.broadcast %173 : vector<1x128xf32> to vector<8x128xf32>
    %180 = arith.addf %178, %179 : vector<8x128xf32>
    %cst_108 = arith.constant 0.000000e+00 : f32
    %181 = vector.broadcast %cst_108 : f32 to vector<8x128xf32>
    %182 = arith.cmpf oge, %180, %181 : vector<8x128xf32>
    %cst_109 = arith.constant 2.000000e-01 : f32
    %183 = vector.broadcast %cst_109 : f32 to vector<8x128xf32>
    %184 = arith.mulf %183, %180 : vector<8x128xf32>
    %185 = arith.select %182, %180, %184 : vector<8x128xi1>, vector<8x128xf32>
    %186 = vector.shape_cast %185 : vector<8x128xf32> to vector<4x2x128xf32>
    %c0_110 = arith.constant 0 : index
    %c0_111 = arith.constant 0 : index
    %c0_112 = arith.constant 0 : index
    %c0_113 = arith.constant 0 : index
    %187 = vector.load %arg9[%c0_110, %c0_111, %c0_112, %c0_113] : memref<1x4x2x128xf32, #tpu.memory_space<vmem>>, vector<1x4x2x128xf32>
    %188 = vector.shape_cast %187 : vector<1x4x2x128xf32> to vector<4x2x128xf32>
    %189 = vector.shape_cast %186 : vector<4x2x128xf32> to vector<1x4x2x128xf32>
    tpu.vector_store %arg9[%c0_110, %c0_111, %c0_112, %c0_113], %189 {strides = array<i32>} : memref<1x4x2x128xf32, #tpu.memory_space<vmem>>, vector<1x4x2x128xf32>,
    return
  }
  func.func @transform_0(%arg0: i32) -> (i32, i32, i32) {
    %c0_i32 = arith.constant 0 : i32
    %c0_i32_0 = arith.constant 0 : i32
    %c0_i32_1 = arith.constant 0 : i32
    return %arg0, %c0_i32, %c0_i32_0 : i32, i32, i32
  }
  func.func @transform_1(%arg0: i32) -> (i32, i32) {
    %c0_i32 = arith.constant 0 : i32
    %c0_i32_0 = arith.constant 0 : i32
    %c0_i32_1 = arith.constant 0 : i32
    return %c0_i32, %c0_i32_0 : i32, i32
  }
  func.func @transform_2(%arg0: i32) -> (i32, i32) {
    %c0_i32 = arith.constant 0 : i32
    %c0_i32_0 = arith.constant 0 : i32
    %c0_i32_1 = arith.constant 0 : i32
    return %c0_i32, %c0_i32_0 : i32, i32
  }
  func.func @transform_3(%arg0: i32) -> (i32, i32) {
    %c0_i32 = arith.constant 0 : i32
    %c0_i32_0 = arith.constant 0 : i32
    %c0_i32_1 = arith.constant 0 : i32
    return %c0_i32, %c0_i32_0 : i32, i32
  }
  func.func @transform_4(%arg0: i32) -> (i32, i32) {
    %c0_i32 = arith.constant 0 : i32
    %c0_i32_0 = arith.constant 0 : i32
    %c0_i32_1 = arith.constant 0 : i32
    return %c0_i32, %c0_i32_0 : i32, i32
  }
  func.func @transform_5(%arg0: i32) -> (i32, i32) {
    %c0_i32 = arith.constant 0 : i32
    %c0_i32_0 = arith.constant 0 : i32
    %c0_i32_1 = arith.constant 0 : i32
    return %c0_i32, %c0_i32_0 : i32, i32
  }
  func.func @transform_6(%arg0: i32) -> (i32, i32) {
    %c0_i32 = arith.constant 0 : i32
    %c0_i32_0 = arith.constant 0 : i32
    %c0_i32_1 = arith.constant 0 : i32
    return %c0_i32, %c0_i32_0 : i32, i32
  }
  func.func @transform_7(%arg0: i32) -> (i32, i32) {
    %c0_i32 = arith.constant 0 : i32
    %c0_i32_0 = arith.constant 0 : i32
    %c0_i32_1 = arith.constant 0 : i32
    return %c0_i32, %c0_i32_0 : i32, i32
  }
  func.func @transform_8(%arg0: i32) -> (i32, i32, i32, i32) {
    %c0_i32 = arith.constant 0 : i32
    %c0_i32_0 = arith.constant 0 : i32
    %c0_i32_1 = arith.constant 0 : i32
    %c0_i32_2 = arith.constant 0 : i32
    return %arg0, %c0_i32, %c0_i32_0, %c0_i32_1 : i32, i32, i32, i32
  }
}

</mosaic_0001>

<llo_original>
// kernel: content_encoder.1
$region0: #{content_encoder.1}
  #allocation0 [shape = 'u32[]', space=smem, size = 0x4, offset = 0x4, fixed_abs, tag = 'smem constant byte address 0x4 - core index']
  #allocation1 [shape = 'u32[144,128]{1,0:T(1,128)}', space=vmem, size = 0x12000, scoped, tag = 'internal scratch']
  #allocation2 [shape = 'f32[4,20,16]{2,1,0:T(8,128)}', space=vmem, size = 0xc000, scoped, tag = 'scratch operand']
  #allocation3 [shape = 'f32[4,10,32]{2,1,0:T(8,128)}', space=vmem, size = 0x8000, scoped, tag = 'scratch operand']
  #allocation4 [shape = 'f32[4,6,64]{2,1,0:T(8,128)}', space=vmem, size = 0x4000, scoped, tag = 'scratch operand']
  %s0 = inlined_call_operand.vmem [shape: f32[2,64,6], index: 0, kind: input, shape index: {}]
  %s1 = inlined_call_operand.vmem [shape: f32[6,16], index: 1, kind: input, shape index: {}]
  %s2 = inlined_call_operand.vmem [shape: bf16[96,32], index: 2, kind: input, shape index: {}]
  %s3 = inlined_call_operand.vmem [shape: bf16[96,64], index: 3, kind: input, shape index: {}]
  %s4 = inlined_call_operand.vmem [shape: bf16[192,128], index: 4, kind: input, shape index: {}]
  %s5 = inlined_call_operand.vmem [shape: f32[2,32], index: 5, kind: input, shape index: {}]
  %s6 = inlined_call_operand.vmem [shape: f32[2,64], index: 6, kind: input, shape index: {}]
  %s7 = inlined_call_operand.vmem [shape: f32[2,128], index: 7, kind: input, shape index: {}]
  %s8 = inlined_call_operand.hbm [shape: f32[2,4,2,128], index: 8, kind: output, shape index: {}]
  %s9 = sld [smem:[#allocation0]]
  $region65: #{content_encoder.1} parent=0
    _
  %s11 = ssub.s32 1, %s9
  %s12 = scalar_select 0, %s11, %s9
  $region1: #{content_encoder.1} parent=0
    #allocation5 [shape = 'u8[8192]{0}', space=vmem, size = 0x2000, scoped, tag = 'output window, operand 0']
    #allocation6 [shape = 's32[2]{0}', space=sflag, size = 0x8, scoped, tag = 'scoped memory for content_encoder.1']
    %13 = vsyncpa [#allocation6], 0
    %s14 = scalar_lea.sflag [#allocation6], 1
    %15 = vsyncpa %s14, 0
    loop: start=0, step=1, limit=4
    $region2: #{content_encoder.1} parent=1 // loop_pre_header
      _
    $region3: #{content_encoder.1} parent=1 // loop_header
      %s17 = sphi 0, %s21
      %p18 = scmp.ge.s32.totalorder %s17, 4
      %s27 = sphi 0, %s29
      %s30 = sphi 0, %s27
      %s31 = sphi 0, %s30
      %s47 = sphi 0, %s31
      %s51 = sphi 0, %s51
      %s53 = sphi 0, %s51
      %s54 = sphi 0, %s53
      %s68 = sphi 0, %s54
      %s72 = sphi 0, %s72
      %s74 = sphi 0, %s72
      %s75 = sphi 0, %s74
      %s89 = sphi 0, %s75
      %s93 = sphi 0, %s93
      %s95 = sphi 0, %s93
      %s96 = sphi 0, %s95
      %s110 = sphi 0, %s96
      %s114 = sphi 0, %s114
      %s116 = sphi 0, %s114
      %s117 = sphi 0, %s116
      %s131 = sphi 0, %s117
      %s135 = sphi 0, %s135
      %s137 = sphi 0, %s135
      %s138 = sphi 0, %s137
      %s152 = sphi 0, %s138
      %s156 = sphi 0, %s156
      %s158 = sphi 0, %s156
      %s159 = sphi 0, %s158
      %s173 = sphi 0, %s159
      %s177 = sphi 0, %s177
      %s179 = sphi 0, %s177
      %s180 = sphi 0, %s179
      %s194 = sphi 0, %s180
      %s200 = sphi 0, %s202
      %s203 = sphi 0, %s200
      %s204 = sphi 0, %s203
      %s220 = sphi 0, %s204
    $region4: #{content_encoder.1} parent=1 // loop_header_branch
      %20 = sbr.rel (%p18) target = $region8
    $region5: #{content_encoder.1} parent=1 // loop_body
      %s22 = ssub.s32 %s17, 1
      %s23 = ssub.s32 %s17, 2
      %s24 = sadd.s32 %s17, 1
      %s25 = ssub.s32 %s17, %s24
      %p26 = scmp.eq.s32.totalorder %s25, 0
      %s28 = sadd.s32 %s27, 1
      %s29 = scalar_select %p26, %s27, %s28
      %p32 = pneg %p26
      %p33 = scmp.eq.s32.totalorder %s17, 1
      %p34 = por %p32, %p33
      %p35 = scmp.ne.s32.totalorder %s27, %s30
      %p36 = scmp.eq.s32.totalorder %s17, 0
      %p37 = por %p35, %p36
      %p38 = scmp.ne.s32.totalorder %s27, %s30
      %p39 = scmp.eq.s32.totalorder %s22, 1
      %p40 = por %p38, %p39
      %p41 = scmp.ne.s32.totalorder %s30, %s31
      %p42 = scmp.eq.s32.totalorder %s22, 0
      %p43 = por %p41, %p42
      %p44 = scmp.ne.s32.totalorder %s30, %s31
      %p45 = scmp.eq.s32.totalorder %s23, 1
      %p46 = por %p44, %p45
      %p48 = scmp.ne.s32.totalorder %s31, %s47
      %p49 = scmp.eq.s32.totalorder %s23, 0
      %p50 = por %p48, %p49
      %s52 = sadd.s32 %s51, 1
      %p55 = scmp.eq.s32.totalorder %s17, 1
      %p56 = scmp.ne.s32.totalorder %s51, %s53
      %p57 = scmp.eq.s32.totalorder %s17, 0
      %p58 = por %p56, %p57
      %p59 = scmp.ne.s32.totalorder %s51, %s53
      %p60 = scmp.eq.s32.totalorder %s22, 1
      %p61 = por %p59, %p60
      %p62 = scmp.ne.s32.totalorder %s53, %s54
      %p63 = scmp.eq.s32.totalorder %s22, 0
      %p64 = por %p62, %p63
      %p65 = scmp.ne.s32.totalorder %s53, %s54
      %p66 = scmp.eq.s32.totalorder %s23, 1
      %p67 = por %p65, %p66
      %p69 = scmp.ne.s32.totalorder %s54, %s68
      %p70 = scmp.eq.s32.totalorder %s23, 0
      %p71 = por %p69, %p70
      %s73 = sadd.s32 %s72, 1
      %p76 = scmp.eq.s32.totalorder %s17, 1
      %p77 = scmp.ne.s32.totalorder %s72, %s74
      %p78 = scmp.eq.s32.totalorder %s17, 0
      %p79 = por %p77, %p78
      %p80 = scmp.ne.s32.totalorder %s72, %s74
      %p81 = scmp.eq.s32.totalorder %s22, 1
      %p82 = por %p80, %p81
      %p83 = scmp.ne.s32.totalorder %s74, %s75
      %p84 = scmp.eq.s32.totalorder %s22, 0
      %p85 = por %p83, %p84
      %p86 = scmp.ne.s32.totalorder %s74, %s75
      %p87 = scmp.eq.s32.totalorder %s23, 1
      %p88 = por %p86, %p87
      %p90 = scmp.ne.s32.totalorder %s75, %s89
      %p91 = scmp.eq.s32.totalorder %s23, 0
      %p92 = por %p90, %p91
      %s94 = sadd.s32 %s93, 1
      %p97 = scmp.eq.s32.totalorder %s17, 1
      %p98 = scmp.ne.s32.totalorder %s93, %s95
      %p99 = scmp.eq.s32.totalorder %s17, 0
      %p100 = por %p98, %p99
      %p101 = scmp.ne.s32.totalorder %s93, %s95
      %p102 = scmp.eq.s32.totalorder %s22, 1
      %p103 = por %p101, %p102
      %p104 = scmp.ne.s32.totalorder %s95, %s96
      %p105 = scmp.eq.s32.totalorder %s22, 0
      %p106 = por %p104, %p105
      %p107 = scmp.ne.s32.totalorder %s95, %s96
      %p108 = scmp.eq.s32.totalorder %s23, 1
      %p109 = por %p107, %p108
      %p111 = scmp.ne.s32.totalorder %s96, %s110
      %p112 = scmp.eq.s32.totalorder %s23, 0
      %p113 = por %p111, %p112
      %s115 = sadd.s32 %s114, 1
      %p118 = scmp.eq.s32.totalorder %s17, 1
      %p119 = scmp.ne.s32.totalorder %s114, %s116
      %p120 = scmp.eq.s32.totalorder %s17, 0
      %p121 = por %p119, %p120
      %p122 = scmp.ne.s32.totalorder %s114, %s116
      %p123 = scmp.eq.s32.totalorder %s22, 1
      %p124 = por %p122, %p123
      %p125 = scmp.ne.s32.totalorder %s116, %s117
      %p126 = scmp.eq.s32.totalorder %s22, 0
      %p127 = por %p125, %p126
      %p128 = scmp.ne.s32.totalorder %s116, %s117
      %p129 = scmp.eq.s32.totalorder %s23, 1
      %p130 = por %p128, %p129
      %p132 = scmp.ne.s32.totalorder %s117, %s131
      %p133 = scmp.eq.s32.totalorder %s23, 0
      %p134 = por %p132, %p133
      %s136 = sadd.s32 %s135, 1
      %p139 = scmp.eq.s32.totalorder %s17, 1
      %p140 = scmp.ne.s32.totalorder %s135, %s137
      %p141 = scmp.eq.s32.totalorder %s17, 0
      %p142 = por %p140, %p141
      %p143 = scmp.ne.s32.totalorder %s135, %s137
      %p144 = scmp.eq.s32.totalorder %s22, 1
      %p145 = por %p143, %p144
      %p146 = scmp.ne.s32.totalorder %s137, %s138
      %p147 = scmp.eq.s32.totalorder %s22, 0
      %p148 = por %p146, %p147
      %p149 = scmp.ne.s32.totalorder %s137, %s138
      %p150 = scmp.eq.s32.totalorder %s23, 1
      %p151 = por %p149, %p150
      %p153 = scmp.ne.s32.totalorder %s138, %s152
      %p154 = scmp.eq.s32.totalorder %s23, 0
      %p155 = por %p153, %p154
      %s157 = sadd.s32 %s156, 1
      %p160 = scmp.eq.s32.totalorder %s17, 1
      %p161 = scmp.ne.s32.totalorder %s156, %s158
      %p162 = scmp.eq.s32.totalorder %s17, 0
      %p163 = por %p161, %p162
      %p164 = scmp.ne.s32.totalorder %s156, %s158
      %p165 = scmp.eq.s32.totalorder %s22, 1
      %p166 = por %p164, %p165
      %p167 = scmp.ne.s32.totalorder %s158, %s159
      %p168 = scmp.eq.s32.totalorder %s22, 0
      %p169 = por %p167, %p168
      %p170 = scmp.ne.s32.totalorder %s158, %s159
      %p171 = scmp.eq.s32.totalorder %s23, 1
      %p172 = por %p170, %p171
      %p174 = scmp.ne.s32.totalorder %s159, %s173
      %p175 = scmp.eq.s32.totalorder %s23, 0
      %p176 = por %p174, %p175
      %s178 = sadd.s32 %s177, 1
      %p181 = scmp.eq.s32.totalorder %s17, 1
      %p182 = scmp.ne.s32.totalorder %s177, %s179
      %p183 = scmp.eq.s32.totalorder %s17, 0
      %p184 = por %p182, %p183
      %p185 = scmp.ne.s32.totalorder %s177, %s179
      %p186 = scmp.eq.s32.totalorder %s22, 1
      %p187 = por %p185, %p186
      %p188 = scmp.ne.s32.totalorder %s179, %s180
      %p189 = scmp.eq.s32.totalorder %s22, 0
      %p190 = por %p188, %p189
      %p191 = scmp.ne.s32.totalorder %s179, %s180
      %p192 = scmp.eq.s32.totalorder %s23, 1
      %p193 = por %p191, %p192
      %p195 = scmp.ne.s32.totalorder %s180, %s194
      %p196 = scmp.eq.s32.totalorder %s23, 0
      %p197 = por %p195, %p196
      %s198 = ssub.s32 %s17, %s24
      %p199 = scmp.eq.s32.totalorder %s198, 0
      %s201 = sadd.s32 %s200, 1
      %s202 = scalar_select %p199, %s200, %s201
      %p205 = pneg %p199
      %p206 = scmp.eq.s32.totalorder %s17, 1
      %p207 = por %p205, %p206
      %p208 = scmp.ne.s32.totalorder %s200, %s203
      %p209 = scmp.eq.s32.totalorder %s17, 0
      %p210 = por %p208, %p209
      %p211 = scmp.ne.s32.totalorder %s200, %s203
      %p212 = scmp.eq.s32.totalorder %s22, 1
      %p213 = por %p211, %p212
      %p214 = scmp.ne.s32.totalorder %s203, %s204
      %p215 = scmp.eq.s32.totalorder %s22, 0
      %p216 = por %p214, %p215
      %p217 = scmp.ne.s32.totalorder %s203, %s204
      %p218 = scmp.eq.s32.totalorder %s23, 1
      %p219 = por %p217, %p218
      %p221 = scmp.ne.s32.totalorder %s204, %s220
      %p222 = scmp.eq.s32.totalorder %s23, 0
      %p223 = por %p221, %p222
      %p224 = scmp.le.s32.totalorder 1, %s17
      %p225 = scmp.lt.s32.totalorder %s17, 3
      %p226 = pnand %p224, %p225
      %p227 = pneg %p226
      // Predicated region
      $region9: #{content_encoder.1} parent=5 // pred_check
        _
      $region10: #{content_encoder.1} parent=5 // pred_check_branch
        %229 = sbr.rel (%p226) target = $region12
      $region11: #{content_encoder.1} parent=5 // pred_region
        %s230 = ssub.s32 %s17, 1
        // Predicated region
        $region13: #{content_encoder.1} parent=11 // pred_check
          %p231 = pneg %p64
        $region14: #{content_encoder.1} parent=11 // pred_check_branch
          %233 = sbr.rel (%p231) target = $region16
        $region15: #{content_encoder.1} parent=11 // pred_region
          _
        $region16: #{content_encoder.1} parent=11 // pred_fallthru
          _
        // Predicated region
        $region17: #{content_encoder.1} parent=11 // pred_check
          %p234 = pneg %p85
        $region18: #{content_encoder.1} parent=11 // pred_check_branch
          %236 = sbr.rel (%p234) target = $region20
        $region19: #{content_encoder.1} parent=11 // pred_region
          _
        $region20: #{content_encoder.1} parent=11 // pred_fallthru
          _
        // Predicated region
        $region21: #{content_encoder.1} parent=11 // pred_check
          %p237 = pneg %p106
        $region22: #{content_encoder.1} parent=11 // pred_check_branch
          %239 = sbr.rel (%p237) target = $region24
        $region23: #{content_encoder.1} parent=11 // pred_region
          _
        $region24: #{content_encoder.1} parent=11 // pred_fallthru
          _
        // Predicated region
        $region25: #{content_encoder.1} parent=11 // pred_check
          %p240 = pneg %p127
        $region26: #{content_encoder.1} parent=11 // pred_check_branch
          %242 = sbr.rel (%p240) target = $region28
        $region27: #{content_encoder.1} parent=11 // pred_region
          _
        $region28: #{content_encoder.1} parent=11 // pred_fallthru
          _
        // Predicated region
        $region29: #{content_encoder.1} parent=11 // pred_check
          %p243 = pneg %p148
        $region30: #{content_encoder.1} parent=11 // pred_check_branch
          %245 = sbr.rel (%p243) target = $region32
        $region31: #{content_encoder.1} parent=11 // pred_region
          _
        $region32: #{content_encoder.1} parent=11 // pred_fallthru
          _
        // Predicated region
        $region33: #{content_encoder.1} parent=11 // pred_check
          %p246 = pneg %p169
        $region34: #{content_encoder.1} parent=11 // pred_check_branch
          %248 = sbr.rel (%p246) target = $region36
        $region35: #{content_encoder.1} parent=11 // pred_region
          _
        $region36: #{content_encoder.1} parent=11 // pred_fallthru
          _
        // Predicated region
        $region37: #{content_encoder.1} parent=11 // pred_check
          %p249 = pneg %p190
        $region38: #{content_encoder.1} parent=11 // pred_check_branch
          %251 = sbr.rel (%p249) target = $region40
        $region39: #{content_encoder.1} parent=11 // pred_region
          _
        $region40: #{content_encoder.1} parent=11 // pred_fallthru
          _
      $region12: #{content_encoder.1} parent=5 // pred_fallthru
        _
      %p252 = scmp.lt.s32.totalorder %s17, 2
      // Predicated region
      $region41: #{content_encoder.1} parent=5 // pred_check
        %p253 = pneg %p252
      $region42: #{content_encoder.1} parent=5 // pred_check_branch
        %255 = sbr.rel (%p253) target = $region44
      $region43: #{content_encoder.1} parent=5 // pred_region
        // Predicated region
        $region45: #{content_encoder.1} parent=43 // pred_check
          %p256 = pneg %p37
        $region46: #{content_encoder.1} parent=43 // pred_check_branch
          %258 = sbr.rel (%p256) target = $region48
        $region47: #{content_encoder.1} parent=43 // pred_region
          %p259 = scmp.lt.s32.totalorder %s17, 1
          %s260 = scalar_select %p259, %s17, 1
          %s261 = smul.addr %s260, 8
          %s262 = smul.addr %s261, 8
          %s263 = scalar_lea.vmem %s0, %s262
        $region48: #{content_encoder.1} parent=43 // pred_fallthru
          _
      $region44: #{content_encoder.1} parent=5 // pred_fallthru
        _
      %p264 = scmp.le.s32.totalorder 1, %s17
      %p265 = scmp.lt.s32.totalorder %s17, 3
      %p266 = pnand %p264, %p265
      %p267 = pneg %p266
      // Predicated region
      $region49: #{content_encoder.1} parent=5 // pred_check
        _
      $region50: #{content_encoder.1} parent=5 // pred_check_branch
        %269 = sbr.rel (%p266) target = $region52
      $region51: #{content_encoder.1} parent=5 // pred_region
        %s270 = ssub.s32 %s17, 1
        %p271 = scmp.lt.s32.totalorder %s22, 1
        %s272 = scalar_select %p271, %s22, 1
        %s273 = smul.addr %s272, 8
        %s274 = smul.addr %s273, 8
        %s275 = scalar_lea.vmem %s0, %s274
        %p276 = pneg %p43
        %p277 = pneg %p40
        %p278 = pneg %p64
        %p279 = pneg %p61
        %p280 = pneg %p85
        %p281 = pneg %p82
        %p282 = pneg %p106
        %p283 = pneg %p103
        %p284 = pneg %p127
        %p285 = pneg %p124
        %p286 = pneg %p148
        %p287 = pneg %p145
        %p288 = pneg %p169
        %p289 = pneg %p166
        %p290 = pneg %p190
        %p291 = pneg %p187
        %p292 = pneg %p216
        %p293 = pneg %p213
        %s294 = sand.u32 %s203, 1
        %s295 = scalar_lea.sflag [#allocation6], %s294
        %s296 = sand.u32 %s203, 1
        %s297 = smul.addr %s296, 8
        %s298 = scalar_lea.vmem [#allocation5], %s297
        %p299 = scmp.lt.s32.totalorder %s22, 1
        %s300 = scalar_select %p299, %s22, 1
        %s301 = smul.addr %s300, 8
        %s302 = smul.addr %s301, 8
        %s303 = scalar_lea.vmem %s0, %s302
        %vm305 = vcmask 123904
        %306 = vst.msk [vmem:[#allocation2] sm:$0x3] %vm305, 0.0
        %307 = vst.msk [vmem:[#allocation2 + $0x18] sm:$0x3] %vm305, 0.0
        %308 = vst.msk [vmem:[#allocation2 + $0x30] sm:$0x3] %vm305, 0.0
        %309 = vst.msk [vmem:[#allocation2 + $0x48] sm:$0x3] %vm305, 0.0
        %310 = vst.msk [vmem:[#allocation2 + $0x12] sm:$0x3] %vm305, 0.0
        %311 = vst.msk [vmem:[#allocation2 + $0x2a] sm:$0x3] %vm305, 0.0
        %312 = vst.msk [vmem:[#allocation2 + $0x42] sm:$0x3] %vm305, 0.0
        %313 = vst.msk [vmem:[#allocation2 + $0x5a] sm:$0x3] %vm305, 0.0
        %vm314 = vcmask 253952
        %315 = vst.msk [vmem:[#allocation3] sm:$0x1] %vm314, 0.0
        %316 = vst.msk [vmem:[#allocation3 + $0x10] sm:$0x1] %vm314, 0.0
        %317 = vst.msk [vmem:[#allocation3 + $0x20] sm:$0x1] %vm314, 0.0
        %318 = vst.msk [vmem:[#allocation3 + $0x30] sm:$0x1] %vm314, 0.0
        %319 = vst.msk [vmem:[#allocation3 + $0x9] sm:$0x1] %vm314, 0.0
        %320 = vst.msk [vmem:[#allocation3 + $0x19] sm:$0x1] %vm314, 0.0
        %321 = vst.msk [vmem:[#allocation3 + $0x29] sm:$0x1] %vm314, 0.0
        %322 = vst.msk [vmem:[#allocation3 + $0x39] sm:$0x1] %vm314, 0.0
        %vm323 = vcmask 516096
        %324 = vst.msk [vmem:[#allocation4] sm:$0x1] %vm323, 0.0
        %325 = vst.msk [vmem:[#allocation4 + $0x8] sm:$0x1] %vm323, 0.0
        %326 = vst.msk [vmem:[#allocation4 + $0x10] sm:$0x1] %vm323, 0.0
        %327 = vst.msk [vmem:[#allocation4 + $0x18] sm:$0x1] %vm323, 0.0
        %328 = vst.msk [vmem:[#allocation4 + $0x5] sm:$0x1] %vm323, 0.0
        %329 = vst.msk [vmem:[#allocation4 + $0xd] sm:$0x1] %vm323, 0.0
        %330 = vst.msk [vmem:[#allocation4 + $0x15] sm:$0x1] %vm323, 0.0
        %331 = vst.msk [vmem:[#allocation4 + $0x1d] sm:$0x1] %vm323, 0.0
        %v332 = vld [vmem:[%s303] sm:$0xff]
        %v333 = vld [vmem:[%s303 + $0x8] sm:$0xff]
        %v334 = vld [vmem:[%s303 + $0x10] sm:$0xff]
        %v335 = vld [vmem:[%s303 + $0x18] sm:$0xff]
        %v336 = vld [vmem:[%s303 + $0x20] sm:$0xff]
        %v337 = vld [vmem:[%s303 + $0x28] sm:$0xff]
        %v338 = vld [vmem:[%s303 + $0x30] sm:$0xff]
        %v339 = vld [vmem:[%s303 + $0x38] sm:$0xff]
        %v340 = vld [vmem:[%s1] sm:$0x3f]
        %342 = vset.pattern.permute.xlu0 0
        %343 = vperm.xlu0 %342, %v332
        %v344 = vpop.permute.xlu0 %343
        %347 = vset.pattern.permute.xlu0 0
        %348 = vperm.xlu0 %347, %v333
        %v349 = vpop.permute.xlu0 %348
        %352 = vset.pattern.permute.xlu0 0
        %353 = vperm.xlu0 %352, %v334
        %v354 = vpop.permute.xlu0 %353
        %357 = vset.pattern.permute.xlu0 0
        %358 = vperm.xlu0 %357, %v335
        %v359 = vpop.permute.xlu0 %358
        %362 = vset.pattern.permute.xlu0 0
        %363 = vperm.xlu0 %362, %v336
        %v364 = vpop.permute.xlu0 %363
        %367 = vset.pattern.permute.xlu0 0
        %368 = vperm.xlu0 %367, %v337
        %v369 = vpop.permute.xlu0 %368
        %372 = vset.pattern.permute.xlu0 0
        %373 = vperm.xlu0 %372, %v338
        %v374 = vpop.permute.xlu0 %373
        %377 = vset.pattern.permute.xlu0 0
        %378 = vperm.xlu0 %377, %v339
        %v379 = vpop.permute.xlu0 %378
        %v381 = vlaneseq
        %v382 = vshrl.u32 %v381, 7
        %v383 = vsub.s32 0, %v382
        %v384 = vrot.slane %v340, %v383
        %v385 = vmul.f32 %v344, %v384
        %v386 = vmul.f32 %v349, %v384
        %v387 = vmul.f32 %v354, %v384
        %v388 = vmul.f32 %v359, %v384
        %v389 = vmul.f32 %v364, %v384
        %v390 = vmul.f32 %v369, %v384
        %v391 = vmul.f32 %v374, %v384
        %v392 = vmul.f32 %v379, %v384
        %v393 = vadd.f32 %v385, 0.0
        %v394 = vadd.f32 %v386, 0.0
        %v395 = vadd.f32 %v387, 0.0
        %v396 = vadd.f32 %v388, 0.0
        %v397 = vadd.f32 %v389, 0.0
        %v398 = vadd.f32 %v390, 0.0
        %v399 = vadd.f32 %v391, 0.0
        %v400 = vadd.f32 %v392, 0.0
        %401 = vset.pattern.permute.xlu0 1
        %402 = vperm.xlu0 %401, %v332
        %v403 = vpop.permute.xlu0 %402
        %405 = vset.pattern.permute.xlu0 1
        %406 = vperm.xlu0 %405, %v333
        %v407 = vpop.permute.xlu0 %406
        %409 = vset.pattern.permute.xlu0 1
        %410 = vperm.xlu0 %409, %v334
        %v411 = vpop.permute.xlu0 %410
        %413 = vset.pattern.permute.xlu0 1
        %414 = vperm.xlu0 %413, %v335
        %v415 = vpop.permute.xlu0 %414
        %417 = vset.pattern.permute.xlu0 1
        %418 = vperm.xlu0 %417, %v336
        %v419 = vpop.permute.xlu0 %418
        %421 = vset.pattern.permute.xlu0 1
        %422 = vperm.xlu0 %421, %v337
        %v423 = vpop.permute.xlu0 %422
        %425 = vset.pattern.permute.xlu0 1
        %426 = vperm.xlu0 %425, %v338
        %v427 = vpop.permute.xlu0 %426
        %429 = vset.pattern.permute.xlu0 1
        %430 = vperm.xlu0 %429, %v339
        %v431 = vpop.permute.xlu0 %430
        %v433 = vlaneseq
        %v434 = vshrl.u32 %v433, 7
        %v435 = vsub.s32 1, %v434
        %v436 = vrot.slane %v340, %v435
        %v437 = vmul.f32 %v403, %v436
        %v438 = vmul.f32 %v407, %v436
        %v439 = vmul.f32 %v411, %v436
        %v440 = vmul.f32 %v415, %v436
        %v441 = vmul.f32 %v419, %v436
        %v442 = vmul.f32 %v423, %v436
        %v443 = vmul.f32 %v427, %v436
        %v444 = vmul.f32 %v431, %v436
        %v445 = vadd.f32 %v393, %v437
        %v446 = vadd.f32 %v394, %v438
        %v447 = vadd.f32 %v395, %v439
        %v448 = vadd.f32 %v396, %v440
        %v449 = vadd.f32 %v397, %v441
        %v450 = vadd.f32 %v398, %v442
        %v451 = vadd.f32 %v399, %v443
        %v452 = vadd.f32 %v400, %v444
        %453 = vset.pattern.permute.xlu0 2
        %454 = vperm.xlu0 %453, %v332
        %v455 = vpop.permute.xlu0 %454
        %457 = vset.pattern.permute.xlu0 2
        %458 = vperm.xlu0 %457, %v333
        %v459 = vpop.permute.xlu0 %458
        %461 = vset.pattern.permute.xlu0 2
        %462 = vperm.xlu0 %461, %v334
        %v463 = vpop.permute.xlu0 %462
        %465 = vset.pattern.permute.xlu0 2
        %466 = vperm.xlu0 %465, %v335
        %v467 = vpop.permute.xlu0 %466
        %469 = vset.pattern.permute.xlu0 2
        %470 = vperm.xlu0 %469, %v336
        %v471 = vpop.permute.xlu0 %470
        %473 = vset.pattern.permute.xlu0 2
        %474 = vperm.xlu0 %473, %v337
        %v475 = vpop.permute.xlu0 %474
        %477 = vset.pattern.permute.xlu0 2
        %478 = vperm.xlu0 %477, %v338
        %v479 = vpop.permute.xlu0 %478
        %481 = vset.pattern.permute.xlu0 2
        %482 = vperm.xlu0 %481, %v339
        %v483 = vpop.permute.xlu0 %482
        %v485 = vlaneseq
        %v486 = vshrl.u32 %v485, 7
        %v487 = vsub.s32 2, %v486
        %v488 = vrot.slane %v340, %v487
        %v489 = vmul.f32 %v455, %v488
        %v490 = vmul.f32 %v459, %v488
        %v491 = vmul.f32 %v463, %v488
        %v492 = vmul.f32 %v467, %v488
        %v493 = vmul.f32 %v471, %v488
        %v494 = vmul.f32 %v475, %v488
        %v495 = vmul.f32 %v479, %v488
        %v496 = vmul.f32 %v483, %v488
        %v497 = vadd.f32 %v445, %v489
        %v498 = vadd.f32 %v446, %v490
        %v499 = vadd.f32 %v447, %v491
        %v500 = vadd.f32 %v448, %v492
        %v501 = vadd.f32 %v449, %v493
        %v502 = vadd.f32 %v450, %v494
        %v503 = vadd.f32 %v451, %v495
        %v504 = vadd.f32 %v452, %v496
        %505 = vset.pattern.permute.xlu0 3
        %506 = vperm.xlu0 %505, %v332
        %v507 = vpop.permute.xlu0 %506
        %509 = vset.pattern.permute.xlu0 3
        %510 = vperm.xlu0 %509, %v333
        %v511 = vpop.permute.xlu0 %510
        %513 = vset.pattern.permute.xlu0 3
        %514 = vperm.xlu0 %513, %v334
        %v515 = vpop.permute.xlu0 %514
        %517 = vset.pattern.permute.xlu0 3
        %518 = vperm.xlu0 %517, %v335
        %v519 = vpop.permute.xlu0 %518
        %521 = vset.pattern.permute.xlu0 3
        %522 = vperm.xlu0 %521, %v336
        %v523 = vpop.permute.xlu0 %522
        %525 = vset.pattern.permute.xlu0 3
        %526 = vperm.xlu0 %525, %v337
        %v527 = vpop.permute.xlu0 %526
        %529 = vset.pattern.permute.xlu0 3
        %530 = vperm.xlu0 %529, %v338
        %v531 = vpop.permute.xlu0 %530
        %533 = vset.pattern.permute.xlu0 3
        %534 = vperm.xlu0 %533, %v339
        %v535 = vpop.permute.xlu0 %534
        %v537 = vlaneseq
        %v538 = vshrl.u32 %v537, 7
        %v539 = vsub.s32 3, %v538
        %v540 = vrot.slane %v340, %v539
        %v541 = vmul.f32 %v507, %v540
        %v542 = vmul.f32 %v511, %v540
        %v543 = vmul.f32 %v515, %v540
        %v544 = vmul.f32 %v519, %v540
        %v545 = vmul.f32 %v523, %v540
        %v546 = vmul.f32 %v527, %v540
        %v547 = vmul.f32 %v531, %v540
        %v548 = vmul.f32 %v535, %v540
        %v549 = vadd.f32 %v497, %v541
        %v550 = vadd.f32 %v498, %v542
        %v551 = vadd.f32 %v499, %v543
        %v552 = vadd.f32 %v500, %v544
        %v553 = vadd.f32 %v501, %v545
        %v554 = vadd.f32 %v502, %v546
        %v555 = vadd.f32 %v503, %v547
        %v556 = vadd.f32 %v504, %v548
        %557 = vset.pattern.permute.xlu0 4
        %558 = vperm.xlu0 %557, %v332
        %v559 = vpop.permute.xlu0 %558
        %561 = vset.pattern.permute.xlu0 4
        %562 = vperm.xlu0 %561, %v333
        %v563 = vpop.permute.xlu0 %562
        %565 = vset.pattern.permute.xlu0 4
        %566 = vperm.xlu0 %565, %v334
        %v567 = vpop.permute.xlu0 %566
        %569 = vset.pattern.permute.xlu0 4
        %570 = vperm.xlu0 %569, %v335
        %v571 = vpop.permute.xlu0 %570
        %573 = vset.pattern.permute.xlu0 4
        %574 = vperm.xlu0 %573, %v336
        %v575 = vpop.permute.xlu0 %574
        %577 = vset.pattern.permute.xlu0 4
        %578 = vperm.xlu0 %577, %v337
        %v579 = vpop.permute.xlu0 %578
        %581 = vset.pattern.permute.xlu0 4
        %582 = vperm.xlu0 %581, %v338
        %v583 = vpop.permute.xlu0 %582
        %585 = vset.pattern.permute.xlu0 4
        %586 = vperm.xlu0 %585, %v339
        %v587 = vpop.permute.xlu0 %586
        %v589 = vlaneseq
        %v590 = vshrl.u32 %v589, 7
        %v591 = vsub.s32 4, %v590
        %v592 = vrot.slane %v340, %v591
        %v593 = vmul.f32 %v559, %v592
        %v594 = vmul.f32 %v563, %v592
        %v595 = vmul.f32 %v567, %v592
        %v596 = vmul.f32 %v571, %v592
        %v597 = vmul.f32 %v575, %v592
        %v598 = vmul.f32 %v579, %v592
        %v599 = vmul.f32 %v583, %v592
        %v600 = vmul.f32 %v587, %v592
        %v601 = vadd.f32 %v549, %v593
        %v602 = vadd.f32 %v550, %v594
        %v603 = vadd.f32 %v551, %v595
        %v604 = vadd.f32 %v552, %v596
        %v605 = vadd.f32 %v553, %v597
        %v606 = vadd.f32 %v554, %v598
        %v607 = vadd.f32 %v555, %v599
        %v608 = vadd.f32 %v556, %v600
        %609 = vset.pattern.permute.xlu0 5
        %610 = vperm.xlu0 %609, %v332
        %v611 = vpop.permute.xlu0 %610
        %613 = vset.pattern.permute.xlu0 5
        %614 = vperm.xlu0 %613, %v333
        %v615 = vpop.permute.xlu0 %614
        %617 = vset.pattern.permute.xlu0 5
        %618 = vperm.xlu0 %617, %v334
        %v619 = vpop.permute.xlu0 %618
        %621 = vset.pattern.permute.xlu0 5
        %622 = vperm.xlu0 %621, %v335
        %v623 = vpop.permute.xlu0 %622
        %625 = vset.pattern.permute.xlu0 5
        %626 = vperm.xlu0 %625, %v336
        %v627 = vpop.permute.xlu0 %626
        %629 = vset.pattern.permute.xlu0 5
        %630 = vperm.xlu0 %629, %v337
        %v631 = vpop.permute.xlu0 %630
        %633 = vset.pattern.permute.xlu0 5
        %634 = vperm.xlu0 %633, %v338
        %v635 = vpop.permute.xlu0 %634
        %637 = vset.pattern.permute.xlu0 5
        %638 = vperm.xlu0 %637, %v339
        %v639 = vpop.permute.xlu0 %638
        %v641 = vlaneseq
        %v642 = vshrl.u32 %v641, 7
        %v643 = vsub.s32 5, %v642
        %v644 = vrot.slane %v340, %v643
        %v645 = vmul.f32 %v611, %v644
        %v646 = vmul.f32 %v615, %v644
        %v647 = vmul.f32 %v619, %v644
        %v648 = vmul.f32 %v623, %v644
        %v649 = vmul.f32 %v627, %v644
        %v650 = vmul.f32 %v631, %v644
        %v651 = vmul.f32 %v635, %v644
        %v652 = vmul.f32 %v639, %v644
        %v653 = vadd.f32 %v601, %v645
        %v654 = vadd.f32 %v602, %v646
        %v655 = vadd.f32 %v603, %v647
        %v656 = vadd.f32 %v604, %v648
        %v657 = vadd.f32 %v605, %v649
        %v658 = vadd.f32 %v606, %v650
        %v659 = vadd.f32 %v607, %v651
        %v660 = vadd.f32 %v608, %v652
        %vm661 = vcmp.ge.f32.partialorder %v653, 0.0
        %vm662 = vcmp.ge.f32.partialorder %v654, 0.0
        %vm663 = vcmp.ge.f32.partialorder %v655, 0.0
        %vm664 = vcmp.ge.f32.partialorder %v656, 0.0
        %vm665 = vcmp.ge.f32.partialorder %v657, 0.0
        %vm666 = vcmp.ge.f32.partialorder %v658, 0.0
        %vm667 = vcmp.ge.f32.partialorder %v659, 0.0
        %vm668 = vcmp.ge.f32.partialorder %v660, 0.0
        %v669 = vmul.f32 %v653, 0.2
        %v670 = vmul.f32 %v654, 0.2
        %v671 = vmul.f32 %v655, 0.2
        %v672 = vmul.f32 %v656, 0.2
        %v673 = vmul.f32 %v657, 0.2
        %v674 = vmul.f32 %v658, 0.2
        %v675 = vmul.f32 %v659, 0.2
        %v676 = vmul.f32 %v660, 0.2
        %v677 = vsel %vm661, %v653, %v669
        %v678 = vsel %vm662, %v654, %v670
        %v679 = vsel %vm663, %v655, %v671
        %v680 = vsel %vm664, %v656, %v672
        %v681 = vsel %vm665, %v657, %v673
        %v682 = vsel %vm666, %v658, %v674
        %v683 = vsel %vm667, %v659, %v675
        %v684 = vsel %vm668, %v660, %v676
        %vm685 = vcmask 130048
        %686 = vst.msk [vmem:[#allocation2 + $0x2] sm:$0xff] %vm685, %v677
        %687 = vst.msk [vmem:[#allocation2 + $0xa] sm:$0xff] %vm685, %v678
        %688 = vst.msk [vmem:[#allocation2 + $0x1a] sm:$0xff] %vm685, %v679
        %689 = vst.msk [vmem:[#allocation2 + $0x22] sm:$0xff] %vm685, %v680
        %690 = vst.msk [vmem:[#allocation2 + $0x32] sm:$0xff] %vm685, %v681
        %691 = vst.msk [vmem:[#allocation2 + $0x3a] sm:$0xff] %vm685, %v682
        %692 = vst.msk [vmem:[#allocation2 + $0x4a] sm:$0xff] %vm685, %v683
        %693 = vst.msk [vmem:[#allocation2 + $0x52] sm:$0xff] %vm685, %v684
        %v694 = vld [vmem:[#allocation2] ss:$2 sm:$0xff]
        %s695 = scalar_lea.vmem [#allocation2], 24
        %v696 = vld [vmem:[%s695] ss:$2 sm:$0xff]
        %s697 = scalar_lea.vmem [#allocation2], 48
        %v698 = vld [vmem:[%s697] ss:$2 sm:$0xff]
        %s699 = scalar_lea.vmem [#allocation2], 72
        %v700 = vld [vmem:[%s699] ss:$2 sm:$0xff]
        %s701 = scalar_lea.vmem [#allocation2], 1
        %v702 = vld [vmem:[%s701] ss:$2 sm:$0xff]
        %s703 = scalar_lea.vmem [#allocation2], 25
        %v704 = vld [vmem:[%s703] ss:$2 sm:$0xff]
        %s705 = scalar_lea.vmem [#allocation2], 49
        %v706 = vld [vmem:[%s705] ss:$2 sm:$0xff]
        %s707 = scalar_lea.vmem [#allocation2], 73
        %v708 = vld [vmem:[%s707] ss:$2 sm:$0xff]
        %s709 = scalar_lea.vmem [#allocation2], 2
        %v710 = vld [vmem:[%s709] ss:$2 sm:$0xff]
        %s711 = scalar_lea.vmem [#allocation2], 26
        %v712 = vld [vmem:[%s711] ss:$2 sm:$0xff]
        %s713 = scalar_lea.vmem [#allocation2], 50
        %v714 = vld [vmem:[%s713] ss:$2 sm:$0xff]
        %s715 = scalar_lea.vmem [#allocation2], 74
        %v716 = vld [vmem:[%s715] ss:$2 sm:$0xff]
        %s717 = scalar_lea.vmem [#allocation2], 3
        %v718 = vld [vmem:[%s717] ss:$2 sm:$0xff]
        %s719 = scalar_lea.vmem [#allocation2], 27
        %v720 = vld [vmem:[%s719] ss:$2 sm:$0xff]
        %s721 = scalar_lea.vmem [#allocation2], 51
        %v722 = vld [vmem:[%s721] ss:$2 sm:$0xff]
        %s723 = scalar_lea.vmem [#allocation2], 75
        %v724 = vld [vmem:[%s723] ss:$2 sm:$0xff]
        %s725 = scalar_lea.vmem [#allocation2], 4
        %v726 = vld [vmem:[%s725] ss:$2 sm:$0xff]
        %s727 = scalar_lea.vmem [#allocation2], 28
        %v728 = vld [vmem:[%s727] ss:$2 sm:$0xff]
        %s729 = scalar_lea.vmem [#allocation2], 52
        %v730 = vld [vmem:[%s729] ss:$2 sm:$0xff]
        %s731 = scalar_lea.vmem [#allocation2], 76
        %v732 = vld [vmem:[%s731] ss:$2 sm:$0xff]
        %s733 = scalar_lea.vmem [#allocation2], 5
        %v734 = vld [vmem:[%s733] ss:$2 sm:$0xff]
        %s735 = scalar_lea.vmem [#allocation2], 29
        %v736 = vld [vmem:[%s735] ss:$2 sm:$0xff]
        %s737 = scalar_lea.vmem [#allocation2], 53
        %v738 = vld [vmem:[%s737] ss:$2 sm:$0xff]
        %s739 = scalar_lea.vmem [#allocation2], 77
        %v740 = vld [vmem:[%s739] ss:$2 sm:$0xff]
        %745 = vrot.lane.b32.xlu0 %v702, 16
        %v746 = vpop.permute.xlu0 %745
        %747 = vrot.lane.b32.xlu0 %v704, 16
        %v748 = vpop.permute.xlu0 %747
        %749 = vrot.lane.b32.xlu0 %v706, 16
        %v750 = vpop.permute.xlu0 %749
        %751 = vrot.lane.b32.xlu0 %v708, 16
        %v752 = vpop.permute.xlu0 %751
        %761 = vrot.lane.b32.xlu0 %v710, 32
        %v762 = vpop.permute.xlu0 %761
        %763 = vrot.lane.b32.xlu0 %v712, 32
        %v764 = vpop.permute.xlu0 %763
        %765 = vrot.lane.b32.xlu0 %v714, 32
        %v766 = vpop.permute.xlu0 %765
        %767 = vrot.lane.b32.xlu0 %v716, 32
        %v768 = vpop.permute.xlu0 %767
        %777 = vrot.lane.b32.xlu0 %v718, 48
        %v778 = vpop.permute.xlu0 %777
        %779 = vrot.lane.b32.xlu0 %v720, 48
        %v780 = vpop.permute.xlu0 %779
        %781 = vrot.lane.b32.xlu0 %v722, 48
        %v782 = vpop.permute.xlu0 %781
        %783 = vrot.lane.b32.xlu0 %v724, 48
        %v784 = vpop.permute.xlu0 %783
        %793 = vrot.lane.b32.xlu0 %v726, 64
        %v794 = vpop.permute.xlu0 %793
        %795 = vrot.lane.b32.xlu0 %v728, 64
        %v796 = vpop.permute.xlu0 %795
        %797 = vrot.lane.b32.xlu0 %v730, 64
        %v798 = vpop.permute.xlu0 %797
        %799 = vrot.lane.b32.xlu0 %v732, 64
        %v800 = vpop.permute.xlu0 %799
        %809 = vrot.lane.b32.xlu0 %v734, 80
        %v810 = vpop.permute.xlu0 %809
        %811 = vrot.lane.b32.xlu0 %v736, 80
        %v812 = vpop.permute.xlu0 %811
        %813 = vrot.lane.b32.xlu0 %v738, 80
        %v814 = vpop.permute.xlu0 %813
        %815 = vrot.lane.b32.xlu0 %v740, 80
        %v816 = vpop.permute.xlu0 %815
        %v821 = vsel %vm685, %v694, %v746
        %v822 = vsel %vm685, %v696, %v748
        %v823 = vsel %vm685, %v698, %v750
        %v824 = vsel %vm685, %v700, %v752
        %vm825 = vcmask 261120
        %v826 = vsel %vm825, %v821, %v762
        %v827 = vsel %vm825, %v822, %v764
        %v828 = vsel %vm825, %v823, %v766
        %v829 = vsel %vm825, %v824, %v768
        %vm830 = vcmask 392192
        %v831 = vsel %vm830, %v826, %v778
        %v832 = vsel %vm830, %v827, %v780
        %v833 = vsel %vm830, %v828, %v782
        %v834 = vsel %vm830, %v829, %v784
        %vm835 = vcmask 523264
        %v836 = vsel %vm835, %v831, %v794
        %v837 = vsel %vm835, %v832, %v796
        %v838 = vsel %vm835, %v833, %v798
        %v839 = vsel %vm835, %v834, %v800
        %vm840 = vcmask 654336
        %v841 = vsel %vm840, %v836, %v810
        %v842 = vsel %vm840, %v837, %v812
        %v843 = vsel %vm840, %v838, %v814
        %v844 = vsel %vm840, %v839, %v816
        %v845 = vpack.c.bf16 %v842, %v841
        %v846 = vpack.c.bf16 %v844, %v843
        %v847 = vld [vmem:[%s2] sm:$0xf]
        %v848 = vld [vmem:[%s2 + $0x4] sm:$0xf]
        %v849 = vld [vmem:[%s2 + $0x8] sm:$0xf]
        %v850 = vld [vmem:[%s2 + $0xc] sm:$0xf]
        %v851 = vld [vmem:[%s2 + $0x10] sm:$0xf]
        %v852 = vld [vmem:[%s2 + $0x14] sm:$0xf]
        %v853 = vld [vmem:[%s2 + $0x18] sm:$0xf]
        %v854 = vld [vmem:[%s2 + $0x1c] sm:$0xf]
        %v855 = vld [vmem:[%s2 + $0x20] sm:$0xf]
        %v856 = vld [vmem:[%s2 + $0x24] sm:$0xf]
        %v857 = vld [vmem:[%s2 + $0x28] sm:$0xf]
        %v858 = vld [vmem:[%s2 + $0x2c] sm:$0xf]
        %v871 = vunpack.c.l.b16 %v847
        %v872 = vunpack.c.l.b16 %v848
        %v873 = vunpack.c.l.b16 %v849
        %v874 = vunpack.c.l.b16 %v850
        %v875 = vunpack.c.l.b16 %v851
        %v876 = vunpack.c.l.b16 %v852
        %v877 = vunpack.c.l.b16 %v853
        %v878 = vunpack.c.l.b16 %v854
        %v879 = vunpack.c.l.b16 %v855
        %v880 = vunpack.c.l.b16 %v856
        %v881 = vunpack.c.l.b16 %v857
        %v882 = vunpack.c.l.b16 %v858
        %v883 = vpack.c.b16 %v872, %v871
        %v884 = vpack.c.b16 %v874, %v873
        %v885 = vpack.c.b16 %v876, %v875
        %v886 = vpack.c.b16 %v878, %v877
        %v887 = vpack.c.b16 %v880, %v879
        %v888 = vpack.c.b16 %v882, %v881
        %vm895 = vcmask 785408
        %v897 = vsel %vm895, %v845, 0
        %v900 = vsel %vm895, %v846, 0
        %902 = vmatprep.subr.bf16.mxu0 0
        %903 = vmatpush1.bf16.msra.mxu0 %v883
        %904 = vmatprep.subr.bf16.mxu0 0
        %905 = vmatpush1.bf16.msra.mxu0 %v884
        %906 = vmatprep.subr.bf16.mxu0 0
        %907 = vmatpush1.bf16.msra.mxu0 %v885
        %908 = vmatprep.subr.bf16.mxu0 0
        %909 = vmatpush1.bf16.msra.mxu0 %v886
        %910 = vmatprep.subr.bf16.mxu0 0
        %911 = vmatpush1.bf16.msra.mxu0 %v887
        %912 = vmatprep.subr.bf16.mxu0 0
        %913 = vmatpush1.bf16.msra.mxu0 %v888
        %914 = vmatprep.subr.bf16.mxu0 0
        %915 = vmatpush1.bf16.msra.mxu0 0
        %916 = vmatprep.subr.bf16.mxu0 0
        %917 = vmatpush1.bf16.msra.mxu0 0
        %918 = vmatprep.subr.bf16.mxu0 0
        %919 = vmatpush1.bf16.msra.mxu0 0
        %920 = vmatprep.subr.bf16.mxu0 0
        %921 = vmatpush1.bf16.msra.mxu0 0
        %922 = vmatprep.subr.bf16.mxu0 0
        %923 = vmatpush1.bf16.msra.mxu0 0
        %924 = vmatprep.subr.bf16.mxu0 0
        %925 = vmatpush1.bf16.msra.mxu0 0
        %926 = vmatprep.subr.bf16.mxu0 0
        %927 = vmatpush1.bf16.msra.mxu0 0
        %928 = vmatprep.subr.bf16.mxu0 0
        %929 = vmatpush1.bf16.msra.mxu0 0
        %930 = vmatprep.subr.bf16.mxu0 0
        %931 = vmatpush1.bf16.msra.mxu0 0
        %932 = vmatprep.subr.bf16.mxu0 0
        %933 = vmatpush1.bf16.msra.mxu0 0
        %934 = vmatprep.mubr.bf16.mxu0 0
        %935 = vmatmul.mubr.bf16.gmra.mrb[0].mxu0 %v897
        %v936 = vpop.f32.mrb[0].mxu0
        %v937 = vadd.f32 0.0, %v936
        %v938 = vpop.f32.mrb[0].mxu0
        %v939 = vpop.f32.mrb[0].mxu0
        %v940 = vadd.f32 0.0, %v939
        %v941 = vpop.f32.mrb[0].mxu0
        %942 = vmatprep.mubr.bf16.mxu0 0
        %943 = vmatmul.mubr.bf16.gmra.mrb[0].mxu0 %v900
        %v944 = vpop.f32.mrb[0].mxu0
        %v945 = vadd.f32 0.0, %v944
        %v946 = vpop.f32.mrb[0].mxu0
        %v947 = vpop.f32.mrb[0].mxu0
        %v948 = vadd.f32 0.0, %v947
        %v949 = vpop.f32.mrb[0].mxu0
        %950 = vdwg.mxu0
        %v951 = vsel %vm825, %v937, 0.0
        %v952 = vsel %vm825, %v940, 0.0
        %v953 = vadd.f32 %v951, %v952
        %v954 = vsel %vm825, %v945, 0.0
        %v955 = vadd.f32 %v953, %v954
        %v956 = vsel %vm825, %v948, 0.0
        %v957 = vadd.f32 %v955, %v956
        %v958 = vrot.slane %v957, 4
        %v959 = vadd.f32 %v957, %v958
        %v960 = vrot.slane %v959, 2
        %v961 = vadd.f32 %v959, %v960
        %v962 = vrot.slane %v961, 1
        %v963 = vadd.f32 %v961, %v962
        %v964 = vmul.f32 %v937, %v937
        %v965 = vmul.f32 %v940, %v940
        %v966 = vmul.f32 %v945, %v945
        %v967 = vmul.f32 %v948, %v948
        %v968 = vsel %vm825, %v964, 0.0
        %v969 = vsel %vm825, %v965, 0.0
        %v970 = vadd.f32 %v968, %v969
        %v971 = vsel %vm825, %v966, 0.0
        %v972 = vadd.f32 %v970, %v971
        %v973 = vsel %vm825, %v967, 0.0
        %v974 = vadd.f32 %v972, %v973
        %v975 = vrot.slane %v974, 4
        %v976 = vadd.f32 %v974, %v975
        %v977 = vrot.slane %v976, 2
        %v978 = vadd.f32 %v976, %v977
        %v979 = vrot.slane %v978, 1
        %v980 = vadd.f32 %v978, %v979
        %v981 = vmul.f32 %v963, 0.03125
        %v982 = vmul.f32 %v980, 0.03125
        %v983 = vmul.f32 %v981, %v981
        %v984 = vsub.f32 %v982, %v983
        %v985 = vmax.f32 %v984, 0.0
        %v986 = vadd.f32 %v985, 1e-05
        %v987 = vrsqrt.pop %v986
        %v988 = vld [vmem:[%s5] sm:$0x1]
        %v989 = vld [vmem:[%s5 + $0x1] sm:$0x1]
        %v990 = vsub.f32 %v937, %v981
        %v991 = vsub.f32 %v940, %v981
        %v992 = vsub.f32 %v945, %v981
        %v993 = vsub.f32 %v948, %v981
        %v994 = vmul.f32 %v987, %v988
        %v995 = vlaneseq
        %v996 = vshrl.u32 %v995, 7
        %v997 = vsub.s32 0, %v996
        %v998 = vrot.slane %v994, %v997
        %v999 = vmul.f32 %v990, %v998
        %v1000 = vmul.f32 %v991, %v998
        %v1001 = vmul.f32 %v992, %v998
        %v1002 = vmul.f32 %v993, %v998
        %v1003 = vlaneseq
        %v1004 = vshrl.u32 %v1003, 7
        %v1005 = vsub.s32 0, %v1004
        %v1006 = vrot.slane %v989, %v1005
        %v1007 = vadd.f32 %v999, %v1006
        %v1008 = vadd.f32 %v1000, %v1006
        %v1009 = vadd.f32 %v1001, %v1006
        %v1010 = vadd.f32 %v1002, %v1006
        %vm1011 = vcmp.ge.f32.partialorder %v1007, 0.0
        %vm1012 = vcmp.ge.f32.partialorder %v1008, 0.0
        %vm1013 = vcmp.ge.f32.partialorder %v1009, 0.0
        %vm1014 = vcmp.ge.f32.partialorder %v1010, 0.0
        %v1015 = vmul.f32 %v1007, 0.2
        %v1016 = vmul.f32 %v1008, 0.2
        %v1017 = vmul.f32 %v1009, 0.2
        %v1018 = vmul.f32 %v1010, 0.2
        %v1019 = vsel %vm1011, %v1007, %v1015
        %v1020 = vsel %vm1012, %v1008, %v1016
        %v1021 = vsel %vm1013, %v1009, %v1017
        %v1022 = vsel %vm1014, %v1010, %v1018
        %1023 = vst.msk [vmem:[#allocation3 + $0x1] sm:$0xff] %vm825, %v1019
        %1024 = vst.msk [vmem:[#allocation3 + $0x11] sm:$0xff] %vm825, %v1020
        %1025 = vst.msk [vmem:[#allocation3 + $0x21] sm:$0xff] %vm825, %v1021
        %1026 = vst.msk [vmem:[#allocation3 + $0x31] sm:$0xff] %vm825, %v1022
        %v1027 = vld [vmem:[#allocation3] ss:$2 sm:$0xf]
        %s1028 = scalar_lea.vmem [#allocation3], 16
        %v1029 = vld [vmem:[%s1028] ss:$2 sm:$0xf]
        %s1030 = scalar_lea.vmem [#allocation3], 32
        %v1031 = vld [vmem:[%s1030] ss:$2 sm:$0xf]
        %s1032 = scalar_lea.vmem [#allocation3], 48
        %v1033 = vld [vmem:[%s1032] ss:$2 sm:$0xf]
        %s1034 = scalar_lea.vmem [#allocation3], 1
        %v1035 = vld [vmem:[%s1034] ss:$2 sm:$0xf]
        %s1036 = scalar_lea.vmem [#allocation3], 17
        %v1037 = vld [vmem:[%s1036] ss:$2 sm:$0xf]
        %s1038 = scalar_lea.vmem [#allocation3], 33
        %v1039 = vld [vmem:[%s1038] ss:$2 sm:$0xf]
        %s1040 = scalar_lea.vmem [#allocation3], 49
        %v1041 = vld [vmem:[%s1040] ss:$2 sm:$0xf]
        %s1042 = scalar_lea.vmem [#allocation3], 2
        %v1043 = vld [vmem:[%s1042] ss:$2 sm:$0xf]
        %s1044 = scalar_lea.vmem [#allocation3], 18
        %v1045 = vld [vmem:[%s1044] ss:$2 sm:$0xf]
        %s1046 = scalar_lea.vmem [#allocation3], 34
        %v1047 = vld [vmem:[%s1046] ss:$2 sm:$0xf]
        %s1048 = scalar_lea.vmem [#allocation3], 50
        %v1049 = vld [vmem:[%s1048] ss:$2 sm:$0xf]
        %v1054 = vcombine.low %v1027, %v1029
        %v1055 = vcombine.low %v1031, %v1033
        %v1062 = vcombine.low %v1035, %v1037
        %v1063 = vcombine.low %v1039, %v1041
        %1064 = vrot.lane.b32.xlu0 %v1062, 32
        %v1065 = vpop.permute.xlu0 %1064
        %1066 = vrot.lane.b32.xlu0 %v1063, 32
        %v1067 = vpop.permute.xlu0 %1066
        %v1074 = vcombine.low %v1043, %v1045
        %v1075 = vcombine.low %v1047, %v1049
        %1076 = vrot.lane.b32.xlu0 %v1074, 64
        %v1077 = vpop.permute.xlu0 %1076
        %1078 = vrot.lane.b32.xlu0 %v1075, 64
        %v1079 = vpop.permute.xlu0 %1078
        %v1082 = vsel %vm825, %v1054, %v1065
        %v1083 = vsel %vm825, %v1055, %v1067
        %v1084 = vsel %vm835, %v1082, %v1077
        %v1085 = vsel %vm835, %v1083, %v1079
        %v1086 = vpack.c.bf16 %v1085, %v1084
        %v1087 = vld [vmem:[%s3] sm:$0xf]
        %v1088 = vld [vmem:[%s3 + $0x4] sm:$0xf]
        %v1089 = vld [vmem:[%s3 + $0x8] sm:$0xf]
        %v1090 = vld [vmem:[%s3 + $0xc] sm:$0xf]
        %v1091 = vld [vmem:[%s3 + $0x10] sm:$0xf]
        %v1092 = vld [vmem:[%s3 + $0x14] sm:$0xf]
        %v1093 = vld [vmem:[%s3 + $0x18] sm:$0xf]
        %v1094 = vld [vmem:[%s3 + $0x1c] sm:$0xf]
        %v1095 = vld [vmem:[%s3 + $0x20] sm:$0xf]
        %v1096 = vld [vmem:[%s3 + $0x24] sm:$0xf]
        %v1097 = vld [vmem:[%s3 + $0x28] sm:$0xf]
        %v1098 = vld [vmem:[%s3 + $0x2c] sm:$0xf]
        %v1111 = vunpack.c.l.b16 %v1087
        %v1112 = vunpack.c.l.b16 %v1088
        %v1113 = vunpack.c.l.b16 %v1089
        %v1114 = vunpack.c.l.b16 %v1090
        %v1115 = vunpack.c.l.b16 %v1091
        %v1116 = vunpack.c.l.b16 %v1092
        %v1117 = vunpack.c.l.b16 %v1093
        %v1118 = vunpack.c.l.b16 %v1094
        %v1119 = vunpack.c.l.b16 %v1095
        %v1120 = vunpack.c.l.b16 %v1096
        %v1121 = vunpack.c.l.b16 %v1097
        %v1122 = vunpack.c.l.b16 %v1098
        %v1123 = vpack.c.b16 %v1112, %v1111
        %v1124 = vpack.c.b16 %v1114, %v1113
        %v1125 = vpack.c.b16 %v1116, %v1115
        %v1126 = vpack.c.b16 %v1118, %v1117
        %v1127 = vpack.c.b16 %v1120, %v1119
        %v1128 = vpack.c.b16 %v1122, %v1121
        %v1136 = vsel %vm895, %v1086, 0
        %1138 = vmatprep.subr.bf16.mxu0 0
        %1139 = vmatpush1.bf16.msra.mxu0 %v1123
        %1140 = vmatprep.subr.bf16.mxu0 0
        %1141 = vmatpush1.bf16.msra.mxu0 %v1124
        %1142 = vmatprep.subr.bf16.mxu0 0
        %1143 = vmatpush1.bf16.msra.mxu0 %v1125
        %1144 = vmatprep.subr.bf16.mxu0 0
        %1145 = vmatpush1.bf16.msra.mxu0 %v1126
        %1146 = vmatprep.subr.bf16.mxu0 0
        %1147 = vmatpush1.bf16.msra.mxu0 %v1127
        %1148 = vmatprep.subr.bf16.mxu0 0
        %1149 = vmatpush1.bf16.msra.mxu0 %v1128
        %1150 = vmatprep.subr.bf16.mxu0 0
        %1151 = vmatpush1.bf16.msra.mxu0 0
        %1152 = vmatprep.subr.bf16.mxu0 0
        %1153 = vmatpush1.bf16.msra.mxu0 0
        %1154 = vmatprep.subr.bf16.mxu0 0
        %1155 = vmatpush1.bf16.msra.mxu0 0
        %1156 = vmatprep.subr.bf16.mxu0 0
        %1157 = vmatpush1.bf16.msra.mxu0 0
        %1158 = vmatprep.subr.bf16.mxu0 0
        %1159 = vmatpush1.bf16.msra.mxu0 0
        %1160 = vmatprep.subr.bf16.mxu0 0
        %1161 = vmatpush1.bf16.msra.mxu0 0
        %1162 = vmatprep.subr.bf16.mxu0 0
        %1163 = vmatpush1.bf16.msra.mxu0 0
        %1164 = vmatprep.subr.bf16.mxu0 0
        %1165 = vmatpush1.bf16.msra.mxu0 0
        %1166 = vmatprep.subr.bf16.mxu0 0
        %1167 = vmatpush1.bf16.msra.mxu0 0
        %1168 = vmatprep.subr.bf16.mxu0 0
        %1169 = vmatpush1.bf16.msra.mxu0 0
        %1170 = vmatprep.mubr.bf16.mxu0 0
        %1171 = vmatmul.mubr.bf16.gmra.mrb[0].mxu0 %v1136
        %v1172 = vpop.f32.mrb[0].mxu0
        %v1173 = vadd.f32 0.0, %v1172
        %v1174 = vpop.f32.mrb[0].mxu0
        %v1175 = vpop.f32.mrb[0].mxu0
        %v1176 = vadd.f32 0.0, %v1175
        %v1177 = vpop.f32.mrb[0].mxu0
        %1178 = vdwg.mxu0
        %v1179 = vsel %vm835, %v1173, 0.0
        %v1180 = vsel %vm835, %v1176, 0.0
        %v1181 = vadd.f32 %v1179, %v1180
        %v1182 = vrot.slane %v1181, 4
        %v1183 = vadd.f32 %v1181, %v1182
        %v1184 = vrot.slane %v1183, 2
        %v1185 = vadd.f32 %v1183, %v1184
        %v1186 = vrot.slane %v1185, 1
        %v1187 = vadd.f32 %v1185, %v1186
        %v1188 = vmul.f32 %v1173, %v1173
        %v1189 = vmul.f32 %v1176, %v1176
        %v1190 = vsel %vm835, %v1188, 0.0
        %v1191 = vsel %vm835, %v1189, 0.0
        %v1192 = vadd.f32 %v1190, %v1191
        %v1193 = vrot.slane %v1192, 4
        %v1194 = vadd.f32 %v1192, %v1193
        %v1195 = vrot.slane %v1194, 2
        %v1196 = vadd.f32 %v1194, %v1195
        %v1197 = vrot.slane %v1196, 1
        %v1198 = vadd.f32 %v1196, %v1197
        %v1199 = vmul.f32 %v1187, 0.0625
        %v1200 = vmul.f32 %v1198, 0.0625
        %v1201 = vmul.f32 %v1199, %v1199
        %v1202 = vsub.f32 %v1200, %v1201
        %v1203 = vmax.f32 %v1202, 0.0
        %v1204 = vadd.f32 %v1203, 1e-05
        %v1205 = vrsqrt.pop %v1204
        %v1206 = vld [vmem:[%s6] sm:$0x1]
        %v1207 = vld [vmem:[%s6 + $0x1] sm:$0x1]
        %v1208 = vsub.f32 %v1173, %v1199
        %v1209 = vsub.f32 %v1176, %v1199
        %v1210 = vmul.f32 %v1205, %v1206
        %v1211 = vlaneseq
        %v1212 = vshrl.u32 %v1211, 7
        %v1213 = vsub.s32 0, %v1212
        %v1214 = vrot.slane %v1210, %v1213
        %v1215 = vmul.f32 %v1208, %v1214
        %v1216 = vmul.f32 %v1209, %v1214
        %v1217 = vlaneseq
        %v1218 = vshrl.u32 %v1217, 7
        %v1219 = vsub.s32 0, %v1218
        %v1220 = vrot.slane %v1207, %v1219
        %v1221 = vadd.f32 %v1215, %v1220
        %v1222 = vadd.f32 %v1216, %v1220
        %vm1223 = vcmp.ge.f32.partialorder %v1221, 0.0
        %vm1224 = vcmp.ge.f32.partialorder %v1222, 0.0
        %v1225 = vmul.f32 %v1221, 0.2
        %v1226 = vmul.f32 %v1222, 0.2
        %v1227 = vsel %vm1223, %v1221, %v1225
        %v1228 = vsel %vm1224, %v1222, %v1226
        %v1231 = vcombine.high %v1227, %v1227
        %v1232 = vcombine.high %v1228, %v1228
        %vm1235 = vcmask 519168
        %1236 = vst.msk [vmem:[#allocation4 + $0x1] sm:$0xf] %vm1235, %v1227
        %1237 = vst.msk [vmem:[#allocation4 + $0x9] sm:$0xf] %vm1235, %v1231
        %1238 = vst.msk [vmem:[#allocation4 + $0x11] sm:$0xf] %vm1235, %v1228
        %1239 = vst.msk [vmem:[#allocation4 + $0x19] sm:$0xf] %vm1235, %v1232
        %v1240 = vld [vmem:[#allocation4] ss:$2 sm:$0x3]
        %s1241 = scalar_lea.vmem [#allocation4], 8
        %v1242 = vld [vmem:[%s1241] ss:$2 sm:$0x3]
        %s1243 = scalar_lea.vmem [#allocation4], 16
        %v1244 = vld [vmem:[%s1243] ss:$2 sm:$0x3]
        %s1245 = scalar_lea.vmem [#allocation4], 24
        %v1246 = vld [vmem:[%s1245] ss:$2 sm:$0x3]
        %s1247 = scalar_lea.vmem [#allocation4], 1
        %v1248 = vld [vmem:[%s1247] ss:$2 sm:$0x3]
        %s1249 = scalar_lea.vmem [#allocation4], 9
        %v1250 = vld [vmem:[%s1249] ss:$2 sm:$0x3]
        %s1251 = scalar_lea.vmem [#allocation4], 17
        %v1252 = vld [vmem:[%s1251] ss:$2 sm:$0x3]
        %s1253 = scalar_lea.vmem [#allocation4], 25
        %v1254 = vld [vmem:[%s1253] ss:$2 sm:$0x3]
        %s1255 = scalar_lea.vmem [#allocation4], 2
        %v1256 = vld [vmem:[%s1255] ss:$2 sm:$0x3]
        %s1257 = scalar_lea.vmem [#allocation4], 10
        %v1258 = vld [vmem:[%s1257] ss:$2 sm:$0x3]
        %s1259 = scalar_lea.vmem [#allocation4], 18
        %v1260 = vld [vmem:[%s1259] ss:$2 sm:$0x3]
        %s1261 = scalar_lea.vmem [#allocation4], 26
        %v1262 = vld [vmem:[%s1261] ss:$2 sm:$0x3]
        %v1267 = vcombine.low %v1240, %v1242
        %v1268 = vcombine.low %v1244, %v1246
        %v1270 = vunpack.c.l.s4 1983009808
        %v1271 = vunpack.c.0.s8 %v1270
        %v1272 = vlaneseq
        %v1273 = vshrl.u32 %v1272, 7
        %v1274 = vsub.s32 %v1271, %v1273
        %v1275 = vrot.slane %v1267, %v1274
        %v1277 = vunpack.c.l.s4 1983009808
        %v1278 = vunpack.c.0.s8 %v1277
        %v1279 = vlaneseq
        %v1280 = vshrl.u32 %v1279, 7
        %v1281 = vsub.s32 %v1278, %v1280
        %v1282 = vrot.slane %v1268, %v1281
        %v1283 = vcombine.low %v1275, %v1282
        %v1289 = vcombine.low %v1248, %v1250
        %v1290 = vcombine.low %v1252, %v1254
        %v1292 = vunpack.c.l.s4 1983009808
        %v1293 = vunpack.c.0.s8 %v1292
        %v1294 = vlaneseq
        %v1295 = vshrl.u32 %v1294, 7
        %v1296 = vsub.s32 %v1293, %v1295
        %v1297 = vrot.slane %v1289, %v1296
        %v1299 = vunpack.c.l.s4 1983009808
        %v1300 = vunpack.c.0.s8 %v1299
        %v1301 = vlaneseq
        %v1302 = vshrl.u32 %v1301, 7
        %v1303 = vsub.s32 %v1300, %v1302
        %v1304 = vrot.slane %v1290, %v1303
        %v1305 = vcombine.low %v1297, %v1304
        %1306 = vrot.lane.b32.xlu0 %v1305, 64
        %v1307 = vpop.permute.xlu0 %1306
        %v1313 = vcombine.low %v1256, %v1258
        %v1314 = vcombine.low %v1260, %v1262
        %v1316 = vunpack.c.l.s4 1983009808
        %v1317 = vunpack.c.0.s8 %v1316
        %v1318 = vlaneseq
        %v1319 = vshrl.u32 %v1318, 7
        %v1320 = vsub.s32 %v1317, %v1319
        %v1321 = vrot.slane %v1313, %v1320
        %v1323 = vunpack.c.l.s4 1983009808
        %v1324 = vunpack.c.0.s8 %v1323
        %v1325 = vlaneseq
        %v1326 = vshrl.u32 %v1325, 7
        %v1327 = vsub.s32 %v1324, %v1326
        %v1328 = vrot.slane %v1314, %v1327
        %v1329 = vcombine.low %v1321, %v1328
        %v1331 = vsel %vm835, %v1283, %v1307
        %v1332 = vpack.c.bf16 %v1331, %v1331
        %v1333 = vpack.c.bf16 %v1329, %v1329
        %v1334 = vld [vmem:[%s4] sm:$0xf]
        %v1335 = vld [vmem:[%s4 + $0x4] sm:$0xf]
        %v1336 = vld [vmem:[%s4 + $0x8] sm:$0xf]
        %v1337 = vld [vmem:[%s4 + $0xc] sm:$0xf]
        %v1338 = vld [vmem:[%s4 + $0x10] sm:$0xf]
        %v1339 = vld [vmem:[%s4 + $0x14] sm:$0xf]
        %v1340 = vld [vmem:[%s4 + $0x18] sm:$0xf]
        %v1341 = vld [vmem:[%s4 + $0x1c] sm:$0xf]
        %v1342 = vld [vmem:[%s4 + $0x20] sm:$0xf]
        %v1343 = vld [vmem:[%s4 + $0x24] sm:$0xf]
        %v1344 = vld [vmem:[%s4 + $0x28] sm:$0xf]
        %v1345 = vld [vmem:[%s4 + $0x2c] sm:$0xf]
        %v1346 = vld [vmem:[%s4 + $0x30] sm:$0xf]
        %v1347 = vld [vmem:[%s4 + $0x34] sm:$0xf]
        %v1348 = vld [vmem:[%s4 + $0x38] sm:$0xf]
        %v1349 = vld [vmem:[%s4 + $0x3c] sm:$0xf]
        %v1350 = vld [vmem:[%s4 + $0x40] sm:$0xf]
        %v1351 = vld [vmem:[%s4 + $0x44] sm:$0xf]
        %v1352 = vld [vmem:[%s4 + $0x48] sm:$0xf]
        %v1353 = vld [vmem:[%s4 + $0x4c] sm:$0xf]
        %v1354 = vld [vmem:[%s4 + $0x50] sm:$0xf]
        %v1355 = vld [vmem:[%s4 + $0x54] sm:$0xf]
        %v1356 = vld [vmem:[%s4 + $0x58] sm:$0xf]
        %v1357 = vld [vmem:[%s4 + $0x5c] sm:$0xf]
        %v1382 = vunpack.c.l.b16 %v1334
        %v1383 = vunpack.c.l.b16 %v1335
        %v1384 = vunpack.c.l.b16 %v1336
        %v1385 = vunpack.c.l.b16 %v1337
        %v1386 = vunpack.c.l.b16 %v1338
        %v1387 = vunpack.c.l.b16 %v1339
        %v1388 = vunpack.c.l.b16 %v1340
        %v1389 = vunpack.c.l.b16 %v1341
        %v1390 = vunpack.c.l.b16 %v1342
        %v1391 = vunpack.c.l.b16 %v1343
        %v1392 = vunpack.c.l.b16 %v1344
        %v1393 = vunpack.c.l.b16 %v1345
        %v1394 = vunpack.c.l.b16 %v1346
        %v1395 = vunpack.c.l.b16 %v1347
        %v1396 = vunpack.c.l.b16 %v1348
        %v1397 = vunpack.c.l.b16 %v1349
        %v1398 = vunpack.c.l.b16 %v1350
        %v1399 = vunpack.c.l.b16 %v1351
        %v1400 = vunpack.c.l.b16 %v1352
        %v1401 = vunpack.c.l.b16 %v1353
        %v1402 = vunpack.c.l.b16 %v1354
        %v1403 = vunpack.c.l.b16 %v1355
        %v1404 = vunpack.c.l.b16 %v1356
        %v1405 = vunpack.c.l.b16 %v1357
        %v1406 = vpack.c.b16 %v1383, %v1382
        %v1407 = vpack.c.b16 %v1385, %v1384
        %v1408 = vpack.c.b16 %v1387, %v1386
        %v1409 = vpack.c.b16 %v1389, %v1388
        %v1410 = vpack.c.b16 %v1391, %v1390
        %v1411 = vpack.c.b16 %v1393, %v1392
        %v1412 = vpack.c.b16 %v1395, %v1394
        %v1413 = vpack.c.b16 %v1397, %v1396
        %v1414 = vpack.c.b16 %v1399, %v1398
        %v1415 = vpack.c.b16 %v1401, %v1400
        %v1416 = vpack.c.b16 %v1403, %v1402
        %v1417 = vpack.c.b16 %v1405, %v1404
        %v1431 = vsel %vm835, %v1333, 0
        %1433 = vmatprep.subr.bf16.mxu0 0
        %1434 = vmatpush1.bf16.msra.mxu0 %v1406
        %1435 = vmatprep.subr.bf16.mxu0 0
        %1436 = vmatpush1.bf16.msra.mxu0 %v1407
        %1437 = vmatprep.subr.bf16.mxu0 0
        %1438 = vmatpush1.bf16.msra.mxu0 %v1408
        %1439 = vmatprep.subr.bf16.mxu0 0
        %1440 = vmatpush1.bf16.msra.mxu0 %v1409
        %1441 = vmatprep.subr.bf16.mxu0 0
        %1442 = vmatpush1.bf16.msra.mxu0 %v1410
        %1443 = vmatprep.subr.bf16.mxu0 0
        %1444 = vmatpush1.bf16.msra.mxu0 %v1411
        %1445 = vmatprep.subr.bf16.mxu0 0
        %1446 = vmatpush1.bf16.msra.mxu0 %v1412
        %1447 = vmatprep.subr.bf16.mxu0 0
        %1448 = vmatpush1.bf16.msra.mxu0 %v1413
        %1449 = vmatprep.subr.bf16.mxu0 0
        %1450 = vmatpush1.bf16.msra.mxu0 %v1414
        %1451 = vmatprep.subr.bf16.mxu0 0
        %1452 = vmatpush1.bf16.msra.mxu0 %v1415
        %1453 = vmatprep.subr.bf16.mxu0 0
        %1454 = vmatpush1.bf16.msra.mxu0 %v1416
        %1455 = vmatprep.subr.bf16.mxu0 0
        %1456 = vmatpush1.bf16.msra.mxu0 %v1417
        %1457 = vmatprep.subr.bf16.mxu0 0
        %1458 = vmatpush1.bf16.msra.mxu0 0
        %1459 = vmatprep.subr.bf16.mxu0 0
        %1460 = vmatpush1.bf16.msra.mxu0 0
        %1461 = vmatprep.subr.bf16.mxu0 0
        %1462 = vmatpush1.bf16.msra.mxu0 0
        %1463 = vmatprep.subr.bf16.mxu0 0
        %1464 = vmatpush1.bf16.msra.mxu0 0
        %1465 = vmatprep.mubr.bf16.mxu0 %v1431
        %1466 = vmatmul.mubr.bf16.gmra.mrb[0].mxu0 %v1332
        %v1467 = vpop.f32.mrb[0].mxu0
        %v1468 = vadd.f32 0.0, %v1467
        %v1469 = vpop.f32.mrb[0].mxu0
        %v1470 = vpop.f32.mrb[0].mxu0
        %v1471 = vpop.f32.mrb[0].mxu0
        %1472 = vdwg.mxu0
        %v1473 = vrot.slane %v1468, 4
        %v1474 = vadd.f32 %v1468, %v1473
        %v1475 = vrot.slane %v1474, 2
        %v1476 = vadd.f32 %v1474, %v1475
        %v1477 = vrot.slane %v1476, 1
        %v1478 = vadd.f32 %v1476, %v1477
        %v1479 = vmul.f32 %v1468, %v1468
        %v1480 = vrot.slane %v1479, 4
        %v1481 = vadd.f32 %v1479, %v1480
        %v1482 = vrot.slane %v1481, 2
        %v1483 = vadd.f32 %v1481, %v1482
        %v1484 = vrot.slane %v1483, 1
        %v1485 = vadd.f32 %v1483, %v1484
        %v1486 = vmul.f32 %v1478, 0.125
        %v1487 = vmul.f32 %v1485, 0.125
        %v1488 = vmul.f32 %v1486, %v1486
        %v1489 = vsub.f32 %v1487, %v1488
        %v1490 = vmax.f32 %v1489, 0.0
        %v1491 = vadd.f32 %v1490, 1e-05
        %v1492 = vrsqrt.pop %v1491
        %v1493 = vld [vmem:[%s7] sm:$0x1]
        %v1494 = vld [vmem:[%s7 + $0x1] sm:$0x1]
        %v1495 = vsub.f32 %v1468, %v1486
        %v1496 = vmul.f32 %v1492, %v1493
        %v1497 = vlaneseq
        %v1498 = vshrl.u32 %v1497, 7
        %v1499 = vsub.s32 0, %v1498
        %v1500 = vrot.slane %v1496, %v1499
        %v1501 = vmul.f32 %v1495, %v1500
        %v1502 = vlaneseq
        %v1503 = vshrl.u32 %v1502, 7
        %v1504 = vsub.s32 0, %v1503
        %v1505 = vrot.slane %v1494, %v1504
        %v1506 = vadd.f32 %v1501, %v1505
        %vm1507 = vcmp.ge.f32.partialorder %v1506, 0.0
        %v1508 = vmul.f32 %v1506, 0.2
        %v1509 = vsel %vm1507, %v1506, %v1508
        %v1511 = vcombine.high %v1509, %v1509
        %v1513 = vunpack.c.l.s4 1983009808
        %v1514 = vunpack.c.0.s8 %v1513
        %v1515 = vlaneseq
        %v1516 = vshrl.u32 %v1515, 7
        %v1517 = vsub.s32 %v1514, %v1516
        %v1518 = vrot.slane %v1509, %v1517
        %v1520 = vunpack.c.l.s4 1983009808
        %v1521 = vunpack.c.0.s8 %v1520
        %v1522 = vlaneseq
        %v1523 = vshrl.u32 %v1522, 7
        %v1524 = vsub.s32 %v1521, %v1523
        %v1525 = vrot.slane %v1511, %v1524
        %v1526 = vcombine.high %v1518, %v1518
        %v1527 = vcombine.high %v1525, %v1525
        %1532 = vst [vmem:[%s298] sm:$0x3] %v1518
        %1533 = vst [vmem:[%s298 + $0x2] sm:$0x3] %v1526
        %1534 = vst [vmem:[%s298 + $0x4] sm:$0x3] %v1525
        %1535 = vst [vmem:[%s298 + $0x6] sm:$0x3] %v1527
        %s1536 = sand.u32 %s203, 1
        %s1537 = scalar_lea.sflag [#allocation6], %s1536
        %s1538 = sand.u32 %s203, 1
        %s1539 = smul.addr %s1538, 8
        %s1540 = scalar_lea.vmem [#allocation5], %s1539
        // Predicated region
        $region53: #{content_encoder.1} parent=51 // pred_check
          %p1541 = pneg %p213
        $region54: #{content_encoder.1} parent=51 // pred_check_branch
          %1543 = sbr.rel (%p1541) target = $region56
        $region55: #{content_encoder.1} parent=51 // pred_region
          %s1545 = ssub.s32 128, 128
          %1546 = vsyncadd %s1537, %s1545
          %s1547 = smul.addr %s22, 4
          %s1548 = smul.addr %s1547, 32
          %s1549 = scalar_lea.hbm %s8, %s1548
          %s1550 = sshll.u32 %s1540, 4
          %s1551 = int_to_ptr.vmem [resolvable:$true] %s1550
          %1556 = dma.vmem_to_hbm [thread:$0]  %s1551, 128, %s1549, %s1537, 32, 32, 2
        $region56: #{content_encoder.1} parent=51 // pred_fallthru
          _
      $region52: #{content_encoder.1} parent=5 // pred_fallthru
        _
      %p1557 = scmp.le.s32.totalorder 2, %s17
      // Predicated region
      $region57: #{content_encoder.1} parent=5 // pred_check
        %p1558 = pneg %p1557
      $region58: #{content_encoder.1} parent=5 // pred_check_branch
        %1560 = sbr.rel (%p1558) target = $region60
      $region59: #{content_encoder.1} parent=5 // pred_region
        %s1561 = ssub.s32 %s17, 2
        // Predicated region
        $region61: #{content_encoder.1} parent=59 // pred_check
          %p1562 = pneg %p219
        $region62: #{content_encoder.1} parent=59 // pred_check_branch
          %1564 = sbr.rel (%p1562) target = $region64
        $region63: #{content_encoder.1} parent=59 // pred_region
          %s1565 = sand.u32 %s204, 1
          %s1566 = scalar_lea.sflag [#allocation6], %s1565
          %s1567 = sand.u32 %s204, 1
          %s1568 = smul.addr %s1567, 8
          %s1569 = scalar_lea.vmem [#allocation5], %s1568
          %1570 = dma.done %s1566, 128
        $region64: #{content_encoder.1} parent=59 // pred_fallthru
          _
      $region60: #{content_encoder.1} parent=5 // pred_fallthru
        _
    $region6: #{content_encoder.1} parent=1 // loop_footer
      %s21 = sadd.s32 1, %s17
    $region7: #{content_encoder.1} parent=1 // loop_footer_branch
      %16 = sbr.rel target = $region3
    $region8: #{content_encoder.1} parent=1 // loop_exit
      _
    %1571 = vsyncpa [#allocation6], 1
    %s1572 = scalar_lea.sflag [#allocation6], 1
    %1573 = vsyncpa %s1572, 1

</llo_original>
